<compile_context>
chip_gen: v7x
topology: tpu7x:2x2x1
jax: 0.10.0
libtpu: 0.0.40
codegen_flags: <defaults>
</compile_context>

<pallas_src>
import functools

import jax
import jax.numpy as jnp
from jax import lax
from jax.experimental import pallas as pl
from jax.experimental.pallas import tpu as pltpu

EPS = 1e-5
_VMEM_LIMIT = 48 * 1024 * 1024  # safe on v7x (64 MiB phys), raises v5e/v6e defaults


def _round_up(x, m):
    return ((x + m - 1) // m) * m


# -----------------------------------------------------------------------------
# Pass A: conv matmul + per-output-column sum / sum-of-squares accumulation.
# -----------------------------------------------------------------------------
def _conv_stats_kernel(patch_ref, w_ref, sum_ref, ssq_ref):
    @pl.when(pl.program_id(0) == 0)
    def _init():
        sum_ref[...] = jnp.zeros_like(sum_ref)
        ssq_ref[...] = jnp.zeros_like(ssq_ref)

    y = jnp.dot(patch_ref[...], w_ref[...], preferred_element_type=jnp.float32)
    sum_ref[...] += jnp.sum(y, axis=0, keepdims=True)
    ssq_ref[...] += jnp.sum(y * y, axis=0, keepdims=True)


# -----------------------------------------------------------------------------
# Pass B: recompute conv matmul, apply folded BN (single FMA) + ReLU.
# -----------------------------------------------------------------------------
def _conv_norm_relu_kernel(patch_ref, w_ref, scale_ref, shift_ref, out_ref):
    y = jnp.dot(patch_ref[...], w_ref[...], preferred_element_type=jnp.float32)
    out_ref[...] = jnp.maximum(y * scale_ref[...] + shift_ref[...], 0.0)


def upblock_forward(x, weight, bias, gamma, beta, padding, *,
                    tile_m=1024, use_bf16_matmul=False):
    """UpBlock forward: nearest-x2 upsample -> Conv2d -> BatchNorm2d (batch stats) -> ReLU.

    x: (N, Cin, H, W) f32; weight: (Cout, Cin, K, K); bias/gamma/beta: (Cout,).
    Returns NCHW output (N, Cout, 2H, 2W).
    """
    N, Cin, H, W = x.shape
    Cout, _, K, _ = weight.shape
    del bias  # train-mode BN subtracts the batch mean, which cancels the conv bias exactly

    # TODO(synk): only the "same"-size configuration (odd K, padding=(K-1)//2, the one
    # UpBlock is used with) is implemented by the sub-pixel decomposition below.
    assert K % 2 == 1 and padding == (K - 1) // 2, (
        "upblock_forward: expected odd kernel_size with padding=(K-1)//2")

    # --- phase decomposition of (nearest-x2 upsample + conv) ----------------------
    P = padding
    dlo = (-P) // 2                 # floor(-P/2)  (python floor division)
    dhi = (K - P) // 2              # floor((K-P)/2)
    Keff = dhi - dlo + 1            # original-pixel footprint per output pixel

    w_t = jnp.transpose(weight.astype(jnp.float32), (2, 3, 1, 0))   # (K, K, Cin, Cout)
    wph = jnp.zeros((2, 2, Keff, Keff, Cin, Cout), jnp.float32)
    for pi in range(2):
        for pj in range(2):
            for ky in range(K):
                p = (pi - P + ky) // 2 - dlo
                for kx in range(K):
                    q = (pj - P + kx) // 2 - dlo
                    wph = wph.at[pi, pj, p, q].add(w_t[ky, kx])

    Kd = Keff * Keff * Cin
    C4 = 4 * Cout
    # rows: (p*Keff + q)*Cin + ci ; cols: (pi*2 + pj)*Cout + co
    w_mat = jnp.transpose(wph, (2, 3, 4, 0, 1, 5)).reshape(Kd, C4)

    # --- im2col over the ORIGINAL image (no upsampled tensor, no jnp.repeat) -------
    xn = jnp.transpose(x.astype(jnp.float32), (0, 2, 3, 1))          # NHWC before any blowup
    xp = jnp.pad(xn, ((0, 0), (-dlo, dhi), (-dlo, dhi), (0, 0)))
    cols = [xp[:, p:p + H, q:q + W, :] for p in range(Keff) for q in range(Keff)]
    patches = jnp.stack(cols, axis=3).reshape(N * H * W, Kd)         # (M, Kd)

    M = N * H * W
    tile_m = min(tile_m, _round_up(M, 8))
    M_pad = _round_up(M, tile_m)
    if M_pad != M:
        # zero rows -> zero conv output -> contribute nothing to sum/sumsq (divisor
        # below uses the true count), and the rows are sliced off after the kernel.
        patches = jnp.pad(patches, ((0, M_pad - M), (0, 0)))

    mm_dtype = jnp.bfloat16 if use_bf16_matmul else jnp.float32
    patches = patches.astype(mm_dtype)
    w_in = w_mat.astype(mm_dtype)

    grid = (M_pad // tile_m,)
    patch_spec = pl.BlockSpec((tile_m, Kd), lambda i: (i, 0))
    w_spec = pl.BlockSpec((Kd, C4), lambda i: (0, 0))
    vec_spec = pl.BlockSpec((1, C4), lambda i: (0, 0))
    out_spec = pl.BlockSpec((tile_m, C4), lambda i: (i, 0))

    # ---- pass A: BN statistics over the full batch (per output column) ------------
    col_sum, col_ssq = pl.pallas_call(
        _conv_stats_kernel,
        out_shape=(jax.ShapeDtypeStruct((1, C4), jnp.float32),
                   jax.ShapeDtypeStruct((1, C4), jnp.float32)),
        grid=grid,
        in_specs=[patch_spec, w_spec],
        out_specs=[vec_spec, vec_spec],
        compiler_params=pltpu.CompilerParams(
            dimension_semantics=("arbitrary",),          # accumulators across the M axis
            vmem_limit_bytes=_VMEM_LIMIT),
    )(patches, w_in)

    # ---- fold BN into one per-column FMA (tiny glue on 4*Cout scalars) -------------
    count = jnp.float32(N * (2 * H) * (2 * W))           # BatchNorm2d reduces over N, Ho, Wo
    ch_sum = jnp.sum(col_sum.reshape(4, Cout), axis=0)   # combine the 4 phase columns
    ch_ssq = jnp.sum(col_ssq.reshape(4, Cout), axis=0)
    mean = ch_sum / count
    var = jnp.maximum(ch_ssq / count - mean * mean, 0.0)  # biased (training-mode) variance
    inv_std = lax.rsqrt(var + EPS)
    scale_c = gamma.astype(jnp.float32) * inv_std
    shift_c = beta.astype(jnp.float32) - mean * scale_c
    scale_col = jnp.tile(scale_c, 4).reshape(1, C4)       # broadcast back to phase-major cols
    shift_col = jnp.tile(shift_c, 4).reshape(1, C4)

    # ---- pass B: recompute matmul, folded BN + ReLU (independent tiles) ------------
    out_cols = pl.pallas_call(
        _conv_norm_relu_kernel,
        out_shape=jax.ShapeDtypeStruct((M_pad, C4), jnp.float32),
        grid=grid,
        in_specs=[patch_spec, w_spec, vec_spec, vec_spec],
        out_specs=out_spec,
        compiler_params=pltpu.CompilerParams(
            dimension_semantics=("parallel",),           # shard tiles over v7x's 2 TCs
            vmem_limit_bytes=_VMEM_LIMIT),
    )(patches, w_in, scale_col, shift_col)

    # ---- pixel-shuffle the 4 phases back to NCHW ------------------------------------
    out = out_cols[:M].reshape(N, H, W, 2, 2, Cout)       # (n, r, c, pi, pj, co)
    out = jnp.transpose(out, (0, 5, 1, 3, 2, 4))          # (n, co, r, pi, c, pj)
    return out.reshape(N, Cout, 2 * H, 2 * W)


# -----------------------------------------------------------------------------
# Plain-JAX reference (test harness only) for a numerical sanity check.
# -----------------------------------------------------------------------------
def _reference_upblock(x, weight, bias, gamma, beta, padding):
    N, Cin, H, W = x.shape
    xu = jnp.broadcast_to(x[:, :, :, None, :, None],
                          (N, Cin, H, 2, W, 2)).reshape(N, Cin, 2 * H, 2 * W)
    y = lax.conv_general_dilated(
        xu, weight, window_strides=(1, 1),
        padding=[(padding, padding), (padding, padding)],
        dimension_numbers=("NCHW", "OIHW", "NCHW"),
        precision=lax.Precision.HIGHEST)
    y = y + bias[None, :, None, None]
    mean = jnp.mean(y, axis=(0, 2, 3), keepdims=True)
    var = jnp.mean((y - mean) ** 2, axis=(0, 2, 3), keepdims=True)
    y = (y - mean) * lax.rsqrt(var + EPS)
    y = gamma[None, :, None, None] * y + beta[None, :, None, None]
    return jnp.maximum(y, 0.0)


if __name__ == "__main__":
    # UpBlock(in_channels=4, out_channels=8, kernel_size=3, padding=1)
    N, Cin, H, W = 2, 4, 16, 16
    Cout, K, pad = 8, 3, 1

    key = jax.random.PRNGKey(0)
    kx, kw, kb, kg, kbe = jax.random.split(key, 5)

    x = jax.random.normal(kx, (N, Cin, H, W), dtype=jnp.float32)
    fan_in = Cin * K * K
    w_scale = 1.0 / jnp.sqrt(jnp.float32(fan_in))
    conv_weight = jax.random.uniform(kw, (Cout, Cin, K, K), jnp.float32,
                                     minval=-w_scale, maxval=w_scale)
    conv_bias = jax.random.uniform(kb, (Cout,), jnp.float32,
                                   minval=-w_scale, maxval=w_scale)
    bn_gamma = 1.0 + 0.1 * jax.random.normal(kg, (Cout,), dtype=jnp.float32)
    bn_beta = 0.1 * jax.random.normal(kbe, (Cout,), dtype=jnp.float32)

    # tile_m=256 -> a 2-step grid even at this small size, exercising the
    # cross-tile BN accumulator path.
    fwd = jax.jit(functools.partial(upblock_forward, padding=pad, tile_m=256))
    y = jax.block_until_ready(fwd(x, conv_weight, conv_bias, bn_gamma, bn_beta))

    assert y.shape == (N, Cout, 2 * H, 2 * W)
    assert bool(jnp.all(jnp.isfinite(y)))

    y_ref = _reference_upblock(x, conv_weight, conv_bias, bn_gamma, bn_beta, pad)
    err = float(jnp.max(jnp.abs(y - y_ref)))
    assert err < 1e-2, f"mismatch vs plain-JAX reference: max abs err = {err}"

    print("KERNEL_OK")
</pallas_src>

<mosaic_0001>
module attributes {stable_mosaic.version = 11 : i64} {
  func.func @_conv_norm_relu_kernel(%arg0: i32, %arg1: memref<256x36xf32, #tpu.memory_space<vmem>>, %arg2: memref<36x32xf32, #tpu.memory_space<vmem>>, %arg3: memref<1x32xf32, #tpu.memory_space<vmem>>, %arg4: memref<1x32xf32, #tpu.memory_space<vmem>>, %arg5: memref<256x32xf32, #tpu.memory_space<vmem>>) attributes {dimension_semantics = [#tpu.dimension_semantics<parallel>], iteration_bounds = array<i64: 2>, scalar_prefetch = 0 : i64, scratch_operands = 0 : i64, tpu.core_type = #tpu.core_type<tc>, window_params = [{transform_indices = @transform_0, window_bounds = array<i64: 256, 36>}, {pipeline_mode = #tpu.pipeline_mode<synchronous>, transform_indices = @transform_1, window_bounds = array<i64: 36, 32>}, {pipeline_mode = #tpu.pipeline_mode<synchronous>, transform_indices = @transform_2, window_bounds = array<i64: 1, 32>}, {pipeline_mode = #tpu.pipeline_mode<synchronous>, transform_indices = @transform_3, window_bounds = array<i64: 1, 32>}, {transform_indices = @transform_4, window_bounds = array<i64: 256, 32>}]} {
    %c0 = arith.constant 0 : index
    %c0_0 = arith.constant 0 : index
    %0 = vector.load %arg1[%c0, %c0_0] : memref<256x36xf32, #tpu.memory_space<vmem>>, vector<256x36xf32>
    %c0_1 = arith.constant 0 : index
    %c0_2 = arith.constant 0 : index
    %1 = vector.load %arg2[%c0_1, %c0_2] : memref<36x32xf32, #tpu.memory_space<vmem>>, vector<36x32xf32>
    %cst = arith.constant dense<0.000000e+00> : vector<256x32xf32>
    %2 = tpu.matmul %0, %1, %cst {dimension_numbers = #tpu.dot_dimension_numbers<[1], [0], [0], [1], [0, 0, 1, 1], [], []>} : vector<256x36xf32>, vector<36x32xf32>, vector<256x32xf32> -> vector<256x32xf32>
    %c0_3 = arith.constant 0 : index
    %c0_4 = arith.constant 0 : index
    %3 = vector.load %arg3[%c0_3, %c0_4] : memref<1x32xf32, #tpu.memory_space<vmem>>, vector<1x32xf32>
    %4 = vector.broadcast %3 : vector<1x32xf32> to vector<256x32xf32>
    %5 = arith.mulf %2, %4 : vector<256x32xf32>
    %c0_5 = arith.constant 0 : index
    %c0_6 = arith.constant 0 : index
    %6 = vector.load %arg4[%c0_5, %c0_6] : memref<1x32xf32, #tpu.memory_space<vmem>>, vector<1x32xf32>
    %7 = vector.broadcast %6 : vector<1x32xf32> to vector<256x32xf32>
    %8 = arith.addf %5, %7 : vector<256x32xf32>
    %cst_7 = arith.constant 0.000000e+00 : f32
    %9 = vector.broadcast %cst_7 : f32 to vector<256x32xf32>
    %10 = arith.maximumf %8, %9 : vector<256x32xf32>
    %c0_8 = arith.constant 0 : index
    %c0_9 = arith.constant 0 : index
    %11 = vector.load %arg5[%c0_8, %c0_9] : memref<256x32xf32, #tpu.memory_space<vmem>>, vector<256x32xf32>
    tpu.vector_store %arg5[%c0_8, %c0_9], %10 {strides = array<i32>} : memref<256x32xf32, #tpu.memory_space<vmem>>, vector<256x32xf32>,
    return
  }
  func.func @transform_0(%arg0: i32) -> (i32, i32) {
    %c0_i32 = arith.constant 0 : i32
    %c0_i32_0 = arith.constant 0 : i32
    return %arg0, %c0_i32 : i32, i32
  }
  func.func @transform_1(%arg0: i32) -> (i32, i32) {
    %c0_i32 = arith.constant 0 : i32
    %c0_i32_0 = arith.constant 0 : i32
    %c0_i32_1 = arith.constant 0 : i32
    return %c0_i32, %c0_i32_0 : i32, i32
  }
  func.func @transform_2(%arg0: i32) -> (i32, i32) {
    %c0_i32 = arith.constant 0 : i32
    %c0_i32_0 = arith.constant 0 : i32
    %c0_i32_1 = arith.constant 0 : i32
    return %c0_i32, %c0_i32_0 : i32, i32
  }
  func.func @transform_3(%arg0: i32) -> (i32, i32) {
    %c0_i32 = arith.constant 0 : i32
    %c0_i32_0 = arith.constant 0 : i32
    %c0_i32_1 = arith.constant 0 : i32
    return %c0_i32, %c0_i32_0 : i32, i32
  }
  func.func @transform_4(%arg0: i32) -> (i32, i32) {
    %c0_i32 = arith.constant 0 : i32
    %c0_i32_0 = arith.constant 0 : i32
    return %arg0, %c0_i32 : i32, i32
  }
}

module attributes {stable_mosaic.version = 11 : i64} {
  func.func @_conv_stats_kernel(%arg0: i32, %arg1: memref<256x36xf32, #tpu.memory_space<vmem>>, %arg2: memref<36x32xf32, #tpu.memory_space<vmem>>, %arg3: memref<1x32xf32, #tpu.memory_space<vmem>>, %arg4: memref<1x32xf32, #tpu.memory_space<vmem>>) attributes {dimension_semantics = [#tpu.dimension_semantics<arbitrary>], iteration_bounds = array<i64: 2>, scalar_prefetch = 0 : i64, scratch_operands = 0 : i64, tpu.core_type = #tpu.core_type<tc>, window_params = [{transform_indices = @transform_0, window_bounds = array<i64: 256, 36>}, {pipeline_mode = #tpu.pipeline_mode<synchronous>, transform_indices = @transform_1, window_bounds = array<i64: 36, 32>}, {pipeline_mode = #tpu.pipeline_mode<synchronous>, transform_indices = @transform_2, window_bounds = array<i64: 1, 32>}, {pipeline_mode = #tpu.pipeline_mode<synchronous>, transform_indices = @transform_3, window_bounds = array<i64: 1, 32>}]} {
    %c0_i32 = arith.constant 0 : i32
    %0 = arith.cmpi eq, %arg0, %c0_i32 : i32
    %1 = arith.extui %0 : i1 to i32
    %c0_i32_0 = arith.constant 0 : i32
    %2 = arith.cmpi ne, %1, %c0_i32_0 : i32
    scf.if %2 {
      %cst_14 = arith.constant 0.000000e+00 : f32
      %17 = vector.broadcast %cst_14 : f32 to vector<1x32xf32>
      %c0_15 = arith.constant 0 : index
      %c0_16 = arith.constant 0 : index
      %18 = vector.load %arg3[%c0_15, %c0_16] : memref<1x32xf32, #tpu.memory_space<vmem>>, vector<1x32xf32>
      tpu.vector_store %arg3[%c0_15, %c0_16], %17 {strides = array<i32>} : memref<1x32xf32, #tpu.memory_space<vmem>>, vector<1x32xf32>,
      %cst_17 = arith.constant 0.000000e+00 : f32
      %19 = vector.broadcast %cst_17 : f32 to vector<1x32xf32>
      %c0_18 = arith.constant 0 : index
      %c0_19 = arith.constant 0 : index
      %20 = vector.load %arg4[%c0_18, %c0_19] : memref<1x32xf32, #tpu.memory_space<vmem>>, vector<1x32xf32>
      tpu.vector_store %arg4[%c0_18, %c0_19], %19 {strides = array<i32>} : memref<1x32xf32, #tpu.memory_space<vmem>>, vector<1x32xf32>,
    } else {
    }
    %c0 = arith.constant 0 : index
    %c0_1 = arith.constant 0 : index
    %3 = vector.load %arg1[%c0, %c0_1] : memref<256x36xf32, #tpu.memory_space<vmem>>, vector<256x36xf32>
    %c0_2 = arith.constant 0 : index
    %c0_3 = arith.constant 0 : index
    %4 = vector.load %arg2[%c0_2, %c0_3] : memref<36x32xf32, #tpu.memory_space<vmem>>, vector<36x32xf32>
    %cst = arith.constant dense<0.000000e+00> : vector<256x32xf32>
    %5 = tpu.matmul %3, %4, %cst {dimension_numbers = #tpu.dot_dimension_numbers<[1], [0], [0], [1], [0, 0, 1, 1], [], []>} : vector<256x36xf32>, vector<36x32xf32>, vector<256x32xf32> -> vector<256x32xf32>
    %c0_4 = arith.constant 0 : index
    %c0_5 = arith.constant 0 : index
    %6 = vector.load %arg3[%c0_4, %c0_5] : memref<1x32xf32, #tpu.memory_space<vmem>>, vector<1x32xf32>
    %cst_6 = arith.constant dense<0.000000e+00> : vector<32xf32>
    %7 = vector.multi_reduction <add>, %5, %cst_6 [0] : vector<256x32xf32> to vector<32xf32>
    %8 = vector.shape_cast %7 : vector<32xf32> to vector<1x32xf32>
    %9 = arith.addf %6, %8 : vector<1x32xf32>
    %c0_7 = arith.constant 0 : index
    %c0_8 = arith.constant 0 : index
    %10 = vector.load %arg3[%c0_7, %c0_8] : memref<1x32xf32, #tpu.memory_space<vmem>>, vector<1x32xf32>
    tpu.vector_store %arg3[%c0_7, %c0_8], %9 {strides = array<i32>} : memref<1x32xf32, #tpu.memory_space<vmem>>, vector<1x32xf32>,
    %c0_9 = arith.constant 0 : index
    %c0_10 = arith.constant 0 : index
    %11 = vector.load %arg4[%c0_9, %c0_10] : memref<1x32xf32, #tpu.memory_space<vmem>>, vector<1x32xf32>
    %12 = arith.mulf %5, %5 : vector<256x32xf32>
    %cst_11 = arith.constant dense<0.000000e+00> : vector<32xf32>
    %13 = vector.multi_reduction <add>, %12, %cst_11 [0] : vector<256x32xf32> to vector<32xf32>
    %14 = vector.shape_cast %13 : vector<32xf32> to vector<1x32xf32>
    %15 = arith.addf %11, %14 : vector<1x32xf32>
    %c0_12 = arith.constant 0 : index
    %c0_13 = arith.constant 0 : index
    %16 = vector.load %arg4[%c0_12, %c0_13] : memref<1x32xf32, #tpu.memory_space<vmem>>, vector<1x32xf32>
    tpu.vector_store %arg4[%c0_12, %c0_13], %15 {strides = array<i32>} : memref<1x32xf32, #tpu.memory_space<vmem>>, vector<1x32xf32>,
    return
  }
  func.func @transform_0(%arg0: i32) -> (i32, i32) {
    %c0_i32 = arith.constant 0 : i32
    %c0_i32_0 = arith.constant 0 : i32
    return %arg0, %c0_i32 : i32, i32
  }
  func.func @transform_1(%arg0: i32) -> (i32, i32) {
    %c0_i32 = arith.constant 0 : i32
    %c0_i32_0 = arith.constant 0 : i32
    %c0_i32_1 = arith.constant 0 : i32
    return %c0_i32, %c0_i32_0 : i32, i32
  }
  func.func @transform_2(%arg0: i32) -> (i32, i32) {
    %c0_i32 = arith.constant 0 : i32
    %c0_i32_0 = arith.constant 0 : i32
    %c0_i32_1 = arith.constant 0 : i32
    return %c0_i32, %c0_i32_0 : i32, i32
  }
  func.func @transform_3(%arg0: i32) -> (i32, i32) {
    %c0_i32 = arith.constant 0 : i32
    %c0_i32_0 = arith.constant 0 : i32
    %c0_i32_1 = arith.constant 0 : i32
    return %c0_i32, %c0_i32_0 : i32, i32
  }
}

</mosaic_0001>

<llo_original>
// kernel: tile.18
$region0: #{tile.18}
  #allocation0 [shape = 's32[1]{0}', space=sflag, size = 0x4, scoped, tag = 'scoped memory for tile.18']
  %s0 = inlined_call_operand.vmem [shape: f32[8], index: 0, kind: input, shape index: {}]
  %s1 = inlined_call_operand.vmem [shape: f32[4,8], index: 1, kind: output, shape index: {}]
  // Predicated region
  $region2: #{tile.18} parent=0 // pred_check
    _
  $region3: #{tile.18} parent=0 // pred_check_branch
    %3 = sbr.rel (0) target = $region5
  $region4: #{tile.18} parent=0 // pred_region
    _
  $region5: #{tile.18} parent=0 // pred_fallthru
    _
  %v4 = vld [vmem:[%s0] ss:$0 sm:$0xff]
  %5 = vst [vmem:[%s1] sm:$0xf] %v4

// kernel: tile.19
$region0: #{tile.19}
  %s0 = inlined_call_operand.vmem [shape: f32[4,8], index: 0, kind: input, shape index: {}]
  %s1 = inlined_call_operand.vmem [shape: f32[1,32], index: 1, kind: output, shape index: {}]
  $region1: #{tile.19} parent=0
    #allocation0 [shape = 'u8[4096]{0}', space=vmem, size = 0x1000, scoped, tag = 'scoped mem for output reshape']
    #allocation1 [shape = 'u8[4096]{0}', space=vmem, size = 0x1000, scoped, tag = 'scoped mem for input reshape']
    %s3 = sshllo.u32 0, 4
    %v4 = vld [vmem:[%s0] sm:%s3]
    %5 = vst [vmem:[#allocation1] sm:%s3] %v4
    %v6 = vld [vmem:[#allocation1] sm:$0x1]
    %vm7 = vcmask 64512
    %8 = vst.msk [vmem:[#allocation0] sm:$0x1] %vm7, %v6
    %s9 = scalar_lea.vmem [#allocation1], 3
    %v10 = vld [vmem:[%s9] sm:$0x1]
    %11 = vrot.lane.b32.xlu0 %v10, 24
    %v12 = vpop.permute.xlu0 %11
    %vm13 = vcmask 261312
    %14 = vst.msk [vmem:[#allocation0] sm:$0x1] %vm13, %v12
    %s15 = scalar_lea.vmem [#allocation1], 2
    %v16 = vld [vmem:[%s15] sm:$0x1]
    %17 = vrot.lane.b32.xlu0 %v16, 16
    %v18 = vpop.permute.xlu0 %17
    %vm19 = vcmask 195712
    %20 = vst.msk [vmem:[#allocation0] sm:$0x1] %vm19, %v18
    %s21 = scalar_lea.vmem [#allocation1], 1
    %v22 = vld [vmem:[%s21] sm:$0x1]
    %23 = vrot.lane.b32.xlu0 %v22, 8
    %v24 = vpop.permute.xlu0 %23
    %vm25 = vcmask 130112
    %26 = vst.msk [vmem:[#allocation0] sm:$0x1] %vm25, %v24
    %s28 = sshllo.u32 0, 1
    %v30 = vld [vmem:[#allocation0] sm:%s28]
    %s31 = sshllo.u32 0, 1
    %32 = vst [vmem:[%s1] sm:%s31] %v30

// kernel: upblock_forward.3
$region0: #{upblock_forward.3}
  #allocation0 [shape = 'u32[]', space=smem, size = 0x4, offset = 0x4, fixed_abs, tag = 'smem constant byte address 0x4 - core index']
  #allocation1 [shape = 'u32[144,128]{1,0:T(1,128)}', space=vmem, size = 0x12000, scoped, tag = 'internal scratch']
  %s0 = inlined_call_operand.vmem [shape: f32[512,36], index: 0, kind: input, shape index: {}]
  %s1 = inlined_call_operand.vmem [shape: f32[36,32], index: 1, kind: input, shape index: {}]
  %s2 = inlined_call_operand.vmem [shape: f32[1,32], index: 2, kind: input, shape index: {}]
  %s3 = inlined_call_operand.vmem [shape: f32[1,32], index: 3, kind: input, shape index: {}]
  %s4 = inlined_call_operand.vmem [shape: f32[512,32], index: 4, kind: output, shape index: {}]
  %s5 = sld [smem:[#allocation0]]
  $region49: #{upblock_forward.3} parent=0
    _
  %s7 = ssub.s32 1, %s5
  %s8 = scalar_select 0, %s7, %s5
  loop: start=0, step=1, limit=4
  $region2: #{upblock_forward.3} parent=0 // loop_pre_header
    _
  $region3: #{upblock_forward.3} parent=0 // loop_header
    %s10 = sphi 0, %s14
    %p11 = scmp.ge.s32.totalorder %s10, 4
    %s20 = sphi 0, %s22
    %s23 = sphi 0, %s20
    %s24 = sphi 0, %s23
    %s40 = sphi 0, %s24
    %s44 = sphi 0, %s44
    %s46 = sphi 0, %s44
    %s47 = sphi 0, %s46
    %s61 = sphi 0, %s47
    %s65 = sphi 0, %s65
    %s67 = sphi 0, %s65
    %s68 = sphi 0, %s67
    %s82 = sphi 0, %s68
    %s86 = sphi 0, %s86
    %s88 = sphi 0, %s86
    %s89 = sphi 0, %s88
    %s103 = sphi 0, %s89
    %s109 = sphi 0, %s111
    %s112 = sphi 0, %s109
    %s113 = sphi 0, %s112
    %s129 = sphi 0, %s113
  $region4: #{upblock_forward.3} parent=0 // loop_header_branch
    %13 = sbr.rel (%p11) target = $region8
  $region5: #{upblock_forward.3} parent=0 // loop_body
    %s15 = ssub.s32 %s10, 1
    %s16 = ssub.s32 %s10, 2
    %s17 = sadd.s32 %s10, 1
    %s18 = ssub.s32 %s10, %s17
    %p19 = scmp.eq.s32.totalorder %s18, 0
    %s21 = sadd.s32 %s20, 1
    %s22 = scalar_select %p19, %s20, %s21
    %p25 = pneg %p19
    %p26 = scmp.eq.s32.totalorder %s10, 1
    %p27 = por %p25, %p26
    %p28 = scmp.ne.s32.totalorder %s20, %s23
    %p29 = scmp.eq.s32.totalorder %s10, 0
    %p30 = por %p28, %p29
    %p31 = scmp.ne.s32.totalorder %s20, %s23
    %p32 = scmp.eq.s32.totalorder %s15, 1
    %p33 = por %p31, %p32
    %p34 = scmp.ne.s32.totalorder %s23, %s24
    %p35 = scmp.eq.s32.totalorder %s15, 0
    %p36 = por %p34, %p35
    %p37 = scmp.ne.s32.totalorder %s23, %s24
    %p38 = scmp.eq.s32.totalorder %s16, 1
    %p39 = por %p37, %p38
    %p41 = scmp.ne.s32.totalorder %s24, %s40
    %p42 = scmp.eq.s32.totalorder %s16, 0
    %p43 = por %p41, %p42
    %s45 = sadd.s32 %s44, 1
    %p48 = scmp.eq.s32.totalorder %s10, 1
    %p49 = scmp.ne.s32.totalorder %s44, %s46
    %p50 = scmp.eq.s32.totalorder %s10, 0
    %p51 = por %p49, %p50
    %p52 = scmp.ne.s32.totalorder %s44, %s46
    %p53 = scmp.eq.s32.totalorder %s15, 1
    %p54 = por %p52, %p53
    %p55 = scmp.ne.s32.totalorder %s46, %s47
    %p56 = scmp.eq.s32.totalorder %s15, 0
    %p57 = por %p55, %p56
    %p58 = scmp.ne.s32.totalorder %s46, %s47
    %p59 = scmp.eq.s32.totalorder %s16, 1
    %p60 = por %p58, %p59
    %p62 = scmp.ne.s32.totalorder %s47, %s61
    %p63 = scmp.eq.s32.totalorder %s16, 0
    %p64 = por %p62, %p63
    %s66 = sadd.s32 %s65, 1
    %p69 = scmp.eq.s32.totalorder %s10, 1
    %p70 = scmp.ne.s32.totalorder %s65, %s67
    %p71 = scmp.eq.s32.totalorder %s10, 0
    %p72 = por %p70, %p71
    %p73 = scmp.ne.s32.totalorder %s65, %s67
    %p74 = scmp.eq.s32.totalorder %s15, 1
    %p75 = por %p73, %p74
    %p76 = scmp.ne.s32.totalorder %s67, %s68
    %p77 = scmp.eq.s32.totalorder %s15, 0
    %p78 = por %p76, %p77
    %p79 = scmp.ne.s32.totalorder %s67, %s68
    %p80 = scmp.eq.s32.totalorder %s16, 1
    %p81 = por %p79, %p80
    %p83 = scmp.ne.s32.totalorder %s68, %s82
    %p84 = scmp.eq.s32.totalorder %s16, 0
    %p85 = por %p83, %p84
    %s87 = sadd.s32 %s86, 1
    %p90 = scmp.eq.s32.totalorder %s10, 1
    %p91 = scmp.ne.s32.totalorder %s86, %s88
    %p92 = scmp.eq.s32.totalorder %s10, 0
    %p93 = por %p91, %p92
    %p94 = scmp.ne.s32.totalorder %s86, %s88
    %p95 = scmp.eq.s32.totalorder %s15, 1
    %p96 = por %p94, %p95
    %p97 = scmp.ne.s32.totalorder %s88, %s89
    %p98 = scmp.eq.s32.totalorder %s15, 0
    %p99 = por %p97, %p98
    %p100 = scmp.ne.s32.totalorder %s88, %s89
    %p101 = scmp.eq.s32.totalorder %s16, 1
    %p102 = por %p100, %p101
    %p104 = scmp.ne.s32.totalorder %s89, %s103
    %p105 = scmp.eq.s32.totalorder %s16, 0
    %p106 = por %p104, %p105
    %s107 = ssub.s32 %s10, %s17
    %p108 = scmp.eq.s32.totalorder %s107, 0
    %s110 = sadd.s32 %s109, 1
    %s111 = scalar_select %p108, %s109, %s110
    %p114 = pneg %p108
    %p115 = scmp.eq.s32.totalorder %s10, 1
    %p116 = por %p114, %p115
    %p117 = scmp.ne.s32.totalorder %s109, %s112
    %p118 = scmp.eq.s32.totalorder %s10, 0
    %p119 = por %p117, %p118
    %p120 = scmp.ne.s32.totalorder %s109, %s112
    %p121 = scmp.eq.s32.totalorder %s15, 1
    %p122 = por %p120, %p121
    %p123 = scmp.ne.s32.totalorder %s112, %s113
    %p124 = scmp.eq.s32.totalorder %s15, 0
    %p125 = por %p123, %p124
    %p126 = scmp.ne.s32.totalorder %s112, %s113
    %p127 = scmp.eq.s32.totalorder %s16, 1
    %p128 = por %p126, %p127
    %p130 = scmp.ne.s32.totalorder %s113, %s129
    %p131 = scmp.eq.s32.totalorder %s16, 0
    %p132 = por %p130, %p131
    %p133 = scmp.le.s32.totalorder 1, %s10
    %p134 = scmp.lt.s32.totalorder %s10, 3
    %p135 = pnand %p133, %p134
    %p136 = pneg %p135
    // Predicated region
    $region9: #{upblock_forward.3} parent=5 // pred_check
      _
    $region10: #{upblock_forward.3} parent=5 // pred_check_branch
      %138 = sbr.rel (%p135) target = $region12
    $region11: #{upblock_forward.3} parent=5 // pred_region
      %s139 = ssub.s32 %s10, 1
      // Predicated region
      $region13: #{upblock_forward.3} parent=11 // pred_check
        %p140 = pneg %p57
      $region14: #{upblock_forward.3} parent=11 // pred_check_branch
        %142 = sbr.rel (%p140) target = $region16
      $region15: #{upblock_forward.3} parent=11 // pred_region
        _
      $region16: #{upblock_forward.3} parent=11 // pred_fallthru
        _
      // Predicated region
      $region17: #{upblock_forward.3} parent=11 // pred_check
        %p143 = pneg %p78
      $region18: #{upblock_forward.3} parent=11 // pred_check_branch
        %145 = sbr.rel (%p143) target = $region20
      $region19: #{upblock_forward.3} parent=11 // pred_region
        _
      $region20: #{upblock_forward.3} parent=11 // pred_fallthru
        _
      // Predicated region
      $region21: #{upblock_forward.3} parent=11 // pred_check
        %p146 = pneg %p99
      $region22: #{upblock_forward.3} parent=11 // pred_check_branch
        %148 = sbr.rel (%p146) target = $region24
      $region23: #{upblock_forward.3} parent=11 // pred_region
        _
      $region24: #{upblock_forward.3} parent=11 // pred_fallthru
        _
    $region12: #{upblock_forward.3} parent=5 // pred_fallthru
      _
    %p149 = scmp.lt.s32.totalorder %s10, 2
    // Predicated region
    $region25: #{upblock_forward.3} parent=5 // pred_check
      %p150 = pneg %p149
    $region26: #{upblock_forward.3} parent=5 // pred_check_branch
      %152 = sbr.rel (%p150) target = $region28
    $region27: #{upblock_forward.3} parent=5 // pred_region
      // Predicated region
      $region29: #{upblock_forward.3} parent=27 // pred_check
        %p153 = pneg %p30
      $region30: #{upblock_forward.3} parent=27 // pred_check_branch
        %155 = sbr.rel (%p153) target = $region32
      $region31: #{upblock_forward.3} parent=27 // pred_region
        %s156 = smul.u32 32, %s10
        %p157 = scmp.lt.s32.totalorder %s156, 63
        %s158 = scalar_select %p157, %s156, 63
        %s159 = smul.addr %s158, 8
        %s160 = scalar_lea.vmem %s0, %s159
        %s161 = smul.u32 32, %s10
      $region32: #{upblock_forward.3} parent=27 // pred_fallthru
        _
    $region28: #{upblock_forward.3} parent=5 // pred_fallthru
      _
    %p162 = scmp.le.s32.totalorder 1, %s10
    %p163 = scmp.lt.s32.totalorder %s10, 3
    %p164 = pnand %p162, %p163
    %p165 = pneg %p164
    // Predicated region
    $region33: #{upblock_forward.3} parent=5 // pred_check
      _
    $region34: #{upblock_forward.3} parent=5 // pred_check_branch
      %167 = sbr.rel (%p164) target = $region36
    $region35: #{upblock_forward.3} parent=5 // pred_region
      %s168 = ssub.s32 %s10, 1
      %s169 = smul.u32 32, %s15
      %p170 = scmp.lt.s32.totalorder %s169, 63
      %s171 = scalar_select %p170, %s169, 63
      %s172 = smul.addr %s171, 8
      %s173 = scalar_lea.vmem %s0, %s172
      %p174 = pneg %p36
      %p175 = pneg %p33
      %p176 = pneg %p57
      %p177 = pneg %p54
      %p178 = pneg %p78
      %p179 = pneg %p75
      %p180 = pneg %p99
      %p181 = pneg %p96
      %p182 = pneg %p125
      %p183 = pneg %p122
      %s184 = smul.u32 32, %s15
      %p185 = scmp.lt.s32.totalorder %s184, 63
      %s186 = scalar_select %p185, %s184, 63
      %s187 = smul.addr %s186, 8
      %s188 = scalar_lea.vmem %s4, %s187
      %s189 = smul.u32 32, %s15
      %p190 = scmp.lt.s32.totalorder %s189, 63
      %s191 = scalar_select %p190, %s189, 63
      %s192 = smul.addr %s191, 8
      %s193 = scalar_lea.vmem %s0, %s192
      %s194 = smul.u32 32, %s15
      %s195 = smul.u32 32, %s15
      %p196 = scmp.lt.s32.totalorder %s195, 63
      %s197 = scalar_select %p196, %s195, 63
      %s198 = smul.addr %s197, 8
      %s199 = scalar_lea.vmem %s4, %s198
      %s200 = smul.u32 32, %s15
      %v201 = vld [vmem:[%s193] sm:$0xff]
      %v202 = vld [vmem:[%s193 + $0x8] sm:$0xff]
      %v203 = vld [vmem:[%s193 + $0x10] sm:$0xff]
      %v204 = vld [vmem:[%s193 + $0x18] sm:$0xff]
      %v205 = vld [vmem:[%s193 + $0x20] sm:$0xff]
      %v206 = vld [vmem:[%s193 + $0x28] sm:$0xff]
      %v207 = vld [vmem:[%s193 + $0x30] sm:$0xff]
      %v208 = vld [vmem:[%s193 + $0x38] sm:$0xff]
      %v209 = vld [vmem:[%s193 + $0x40] sm:$0xff]
      %v210 = vld [vmem:[%s193 + $0x48] sm:$0xff]
      %v211 = vld [vmem:[%s193 + $0x50] sm:$0xff]
      %v212 = vld [vmem:[%s193 + $0x58] sm:$0xff]
      %v213 = vld [vmem:[%s193 + $0x60] sm:$0xff]
      %v214 = vld [vmem:[%s193 + $0x68] sm:$0xff]
      %v215 = vld [vmem:[%s193 + $0x70] sm:$0xff]
      %v216 = vld [vmem:[%s193 + $0x78] sm:$0xff]
      %v217 = vld [vmem:[%s193 + $0x80] sm:$0xff]
      %v218 = vld [vmem:[%s193 + $0x88] sm:$0xff]
      %v219 = vld [vmem:[%s193 + $0x90] sm:$0xff]
      %v220 = vld [vmem:[%s193 + $0x98] sm:$0xff]
      %v221 = vld [vmem:[%s193 + $0xa0] sm:$0xff]
      %v222 = vld [vmem:[%s193 + $0xa8] sm:$0xff]
      %v223 = vld [vmem:[%s193 + $0xb0] sm:$0xff]
      %v224 = vld [vmem:[%s193 + $0xb8] sm:$0xff]
      %v225 = vld [vmem:[%s193 + $0xc0] sm:$0xff]
      %v226 = vld [vmem:[%s193 + $0xc8] sm:$0xff]
      %v227 = vld [vmem:[%s193 + $0xd0] sm:$0xff]
      %v228 = vld [vmem:[%s193 + $0xd8] sm:$0xff]
      %v229 = vld [vmem:[%s193 + $0xe0] sm:$0xff]
      %v230 = vld [vmem:[%s193 + $0xe8] sm:$0xff]
      %v231 = vld [vmem:[%s193 + $0xf0] sm:$0xff]
      %v232 = vld [vmem:[%s193 + $0xf8] sm:$0xff]
      %v233 = vld [vmem:[%s1] sm:$0xff]
      %v234 = vld [vmem:[%s1 + $0x8] sm:$0xff]
      %v235 = vld [vmem:[%s1 + $0x10] sm:$0xff]
      %v236 = vld [vmem:[%s1 + $0x18] sm:$0xff]
      %v237 = vld [vmem:[%s1 + $0x20] sm:$0xf]
      %vm238 = vcmask 293888
      %v240 = vsel %vm238, %v201, 0
      %v243 = vsel %vm238, %v202, 0
      %v246 = vsel %vm238, %v203, 0
      %v249 = vsel %vm238, %v204, 0
      %v252 = vsel %vm238, %v205, 0
      %v255 = vsel %vm238, %v206, 0
      %v258 = vsel %vm238, %v207, 0
      %v261 = vsel %vm238, %v208, 0
      %v264 = vsel %vm238, %v209, 0
      %v267 = vsel %vm238, %v210, 0
      %v270 = vsel %vm238, %v211, 0
      %v273 = vsel %vm238, %v212, 0
      %v276 = vsel %vm238, %v213, 0
      %v279 = vsel %vm238, %v214, 0
      %v282 = vsel %vm238, %v215, 0
      %v285 = vsel %vm238, %v216, 0
      %v288 = vsel %vm238, %v217, 0
      %v291 = vsel %vm238, %v218, 0
      %v294 = vsel %vm238, %v219, 0
      %v297 = vsel %vm238, %v220, 0
      %v300 = vsel %vm238, %v221, 0
      %v303 = vsel %vm238, %v222, 0
      %v306 = vsel %vm238, %v223, 0
      %v309 = vsel %vm238, %v224, 0
      %v312 = vsel %vm238, %v225, 0
      %v315 = vsel %vm238, %v226, 0
      %v318 = vsel %vm238, %v227, 0
      %v321 = vsel %vm238, %v228, 0
      %v324 = vsel %vm238, %v229, 0
      %v327 = vsel %vm238, %v230, 0
      %v330 = vsel %vm238, %v231, 0
      %v333 = vsel %vm238, %v232, 0
      %vm335 = vcmask 1043456
      %v337 = vsel %vm335, %v237, 0
      %339 = vmatprep.subr.mxu0 0.0
      %340 = vmatpush1.msra.mxu0 %v233
      %341 = vmatprep.subr.mxu0 0.0
      %342 = vmatpush1.msra.mxu0 %v234
      %343 = vmatprep.subr.mxu0 0.0
      %344 = vmatpush1.msra.mxu0 %v235
      %345 = vmatprep.subr.mxu0 0.0
      %346 = vmatpush1.msra.mxu0 %v236
      %347 = vmatprep.subr.mxu0 0.0
      %348 = vmatpush1.msra.mxu0 %v337
      %349 = vmatprep.subr.mxu0 0.0
      %350 = vmatpush1.msra.mxu0 0.0
      %351 = vmatprep.subr.mxu0 0.0
      %352 = vmatpush1.msra.mxu0 0.0
      %353 = vmatprep.subr.mxu0 0.0
      %354 = vmatpush1.msra.mxu0 0.0
      %355 = vmatprep.subr.mxu0 0.0
      %356 = vmatpush1.msra.mxu0 0.0
      %357 = vmatprep.subr.mxu0 0.0
      %358 = vmatpush1.msra.mxu0 0.0
      %359 = vmatprep.subr.mxu0 0.0
      %360 = vmatpush1.msra.mxu0 0.0
      %361 = vmatprep.subr.mxu0 0.0
      %362 = vmatpush1.msra.mxu0 0.0
      %363 = vmatprep.subr.mxu0 0.0
      %364 = vmatpush1.msra.mxu0 0.0
      %365 = vmatprep.subr.mxu0 0.0
      %366 = vmatpush1.msra.mxu0 0.0
      %367 = vmatprep.subr.mxu0 0.0
      %368 = vmatpush1.msra.mxu0 0.0
      %369 = vmatprep.subr.mxu0 0.0
      %370 = vmatpush1.msra.mxu0 0.0
      %371 = vmatprep.subr.mxu0 0.0
      %372 = vmatpush1.msra.mxu0 0.0
      %373 = vmatprep.subr.mxu0 0.0
      %374 = vmatpush1.msra.mxu0 0.0
      %375 = vmatprep.subr.mxu0 0.0
      %376 = vmatpush1.msra.mxu0 0.0
      %377 = vmatprep.subr.mxu0 0.0
      %378 = vmatpush1.msra.mxu0 0.0
      %379 = vmatprep.subr.mxu0 0.0
      %380 = vmatpush1.msra.mxu0 0.0
      %381 = vmatprep.subr.mxu0 0.0
      %382 = vmatpush1.msra.mxu0 0.0
      %383 = vmatprep.subr.mxu0 0.0
      %384 = vmatpush1.msra.mxu0 0.0
      %385 = vmatprep.subr.mxu0 0.0
      %386 = vmatpush1.msra.mxu0 0.0
      %387 = vmatprep.subr.mxu0 0.0
      %388 = vmatpush1.msra.mxu0 0.0
      %389 = vmatprep.subr.mxu0 0.0
      %390 = vmatpush1.msra.mxu0 0.0
      %391 = vmatprep.subr.mxu0 0.0
      %392 = vmatpush1.msra.mxu0 0.0
      %393 = vmatprep.subr.mxu0 0.0
      %394 = vmatpush1.msra.mxu0 0.0
      %395 = vmatprep.subr.mxu0 0.0
      %396 = vmatpush1.msra.mxu0 0.0
      %397 = vmatprep.subr.mxu0 0.0
      %398 = vmatpush1.msra.mxu0 0.0
      %399 = vmatprep.subr.mxu0 0.0
      %400 = vmatpush1.msra.mxu0 0.0
      %401 = vmatprep.subr.mxu0 0.0
      %402 = vmatpush1.msra.mxu0 0.0
      %403 = vmatprep.mubr.f32.mxu0 0.0
      %404 = vmatmul.mubr.f32.gmra.mrb[0].mxu0 %v240
      %v405 = vpop.f32.mrb[0].mxu0
      %v406 = vadd.f32 0.0, %v405
      %v407 = vpop.f32.mrb[0].mxu0
      %408 = vmatprep.mubr.f32.mxu0 0.0
      %409 = vmatmul.mubr.f32.gmra.mrb[0].mxu0 %v243
      %v410 = vpop.f32.mrb[0].mxu0
      %v411 = vadd.f32 0.0, %v410
      %v412 = vpop.f32.mrb[0].mxu0
      %413 = vmatprep.mubr.f32.mxu0 0.0
      %414 = vmatmul.mubr.f32.gmra.mrb[0].mxu0 %v246
      %v415 = vpop.f32.mrb[0].mxu0
      %v416 = vadd.f32 0.0, %v415
      %v417 = vpop.f32.mrb[0].mxu0
      %418 = vmatprep.mubr.f32.mxu0 0.0
      %419 = vmatmul.mubr.f32.gmra.mrb[0].mxu0 %v249
      %v420 = vpop.f32.mrb[0].mxu0
      %v421 = vadd.f32 0.0, %v420
      %v422 = vpop.f32.mrb[0].mxu0
      %423 = vmatprep.mubr.f32.mxu0 0.0
      %424 = vmatmul.mubr.f32.gmra.mrb[0].mxu0 %v252
      %v425 = vpop.f32.mrb[0].mxu0
      %v426 = vadd.f32 0.0, %v425
      %v427 = vpop.f32.mrb[0].mxu0
      %428 = vmatprep.mubr.f32.mxu0 0.0
      %429 = vmatmul.mubr.f32.gmra.mrb[0].mxu0 %v255
      %v430 = vpop.f32.mrb[0].mxu0
      %v431 = vadd.f32 0.0, %v430
      %v432 = vpop.f32.mrb[0].mxu0
      %433 = vmatprep.mubr.f32.mxu0 0.0
      %434 = vmatmul.mubr.f32.gmra.mrb[0].mxu0 %v258
      %v435 = vpop.f32.mrb[0].mxu0
      %v436 = vadd.f32 0.0, %v435
      %v437 = vpop.f32.mrb[0].mxu0
      %438 = vmatprep.mubr.f32.mxu0 0.0
      %439 = vmatmul.mubr.f32.gmra.mrb[0].mxu0 %v261
      %v440 = vpop.f32.mrb[0].mxu0
      %v441 = vadd.f32 0.0, %v440
      %v442 = vpop.f32.mrb[0].mxu0
      %443 = vmatprep.mubr.f32.mxu0 0.0
      %444 = vmatmul.mubr.f32.gmra.mrb[0].mxu0 %v264
      %v445 = vpop.f32.mrb[0].mxu0
      %v446 = vadd.f32 0.0, %v445
      %v447 = vpop.f32.mrb[0].mxu0
      %448 = vmatprep.mubr.f32.mxu0 0.0
      %449 = vmatmul.mubr.f32.gmra.mrb[0].mxu0 %v267
      %v450 = vpop.f32.mrb[0].mxu0
      %v451 = vadd.f32 0.0, %v450
      %v452 = vpop.f32.mrb[0].mxu0
      %453 = vmatprep.mubr.f32.mxu0 0.0
      %454 = vmatmul.mubr.f32.gmra.mrb[0].mxu0 %v270
      %v455 = vpop.f32.mrb[0].mxu0
      %v456 = vadd.f32 0.0, %v455
      %v457 = vpop.f32.mrb[0].mxu0
      %458 = vmatprep.mubr.f32.mxu0 0.0
      %459 = vmatmul.mubr.f32.gmra.mrb[0].mxu0 %v273
      %v460 = vpop.f32.mrb[0].mxu0
      %v461 = vadd.f32 0.0, %v460
      %v462 = vpop.f32.mrb[0].mxu0
      %463 = vmatprep.mubr.f32.mxu0 0.0
      %464 = vmatmul.mubr.f32.gmra.mrb[0].mxu0 %v276
      %v465 = vpop.f32.mrb[0].mxu0
      %v466 = vadd.f32 0.0, %v465
      %v467 = vpop.f32.mrb[0].mxu0
      %468 = vmatprep.mubr.f32.mxu0 0.0
      %469 = vmatmul.mubr.f32.gmra.mrb[0].mxu0 %v279
      %v470 = vpop.f32.mrb[0].mxu0
      %v471 = vadd.f32 0.0, %v470
      %v472 = vpop.f32.mrb[0].mxu0
      %473 = vmatprep.mubr.f32.mxu0 0.0
      %474 = vmatmul.mubr.f32.gmra.mrb[0].mxu0 %v282
      %v475 = vpop.f32.mrb[0].mxu0
      %v476 = vadd.f32 0.0, %v475
      %v477 = vpop.f32.mrb[0].mxu0
      %478 = vmatprep.mubr.f32.mxu0 0.0
      %479 = vmatmul.mubr.f32.gmra.mrb[0].mxu0 %v285
      %v480 = vpop.f32.mrb[0].mxu0
      %v481 = vadd.f32 0.0, %v480
      %v482 = vpop.f32.mrb[0].mxu0
      %483 = vmatprep.mubr.f32.mxu0 0.0
      %484 = vmatmul.mubr.f32.gmra.mrb[0].mxu0 %v288
      %v485 = vpop.f32.mrb[0].mxu0
      %v486 = vadd.f32 0.0, %v485
      %v487 = vpop.f32.mrb[0].mxu0
      %488 = vmatprep.mubr.f32.mxu0 0.0
      %489 = vmatmul.mubr.f32.gmra.mrb[0].mxu0 %v291
      %v490 = vpop.f32.mrb[0].mxu0
      %v491 = vadd.f32 0.0, %v490
      %v492 = vpop.f32.mrb[0].mxu0
      %493 = vmatprep.mubr.f32.mxu0 0.0
      %494 = vmatmul.mubr.f32.gmra.mrb[0].mxu0 %v294
      %v495 = vpop.f32.mrb[0].mxu0
      %v496 = vadd.f32 0.0, %v495
      %v497 = vpop.f32.mrb[0].mxu0
      %498 = vmatprep.mubr.f32.mxu0 0.0
      %499 = vmatmul.mubr.f32.gmra.mrb[0].mxu0 %v297
      %v500 = vpop.f32.mrb[0].mxu0
      %v501 = vadd.f32 0.0, %v500
      %v502 = vpop.f32.mrb[0].mxu0
      %503 = vmatprep.mubr.f32.mxu0 0.0
      %504 = vmatmul.mubr.f32.gmra.mrb[0].mxu0 %v300
      %v505 = vpop.f32.mrb[0].mxu0
      %v506 = vadd.f32 0.0, %v505
      %v507 = vpop.f32.mrb[0].mxu0
      %508 = vmatprep.mubr.f32.mxu0 0.0
      %509 = vmatmul.mubr.f32.gmra.mrb[0].mxu0 %v303
      %v510 = vpop.f32.mrb[0].mxu0
      %v511 = vadd.f32 0.0, %v510
      %v512 = vpop.f32.mrb[0].mxu0
      %513 = vmatprep.mubr.f32.mxu0 0.0
      %514 = vmatmul.mubr.f32.gmra.mrb[0].mxu0 %v306
      %v515 = vpop.f32.mrb[0].mxu0
      %v516 = vadd.f32 0.0, %v515
      %v517 = vpop.f32.mrb[0].mxu0
      %518 = vmatprep.mubr.f32.mxu0 0.0
      %519 = vmatmul.mubr.f32.gmra.mrb[0].mxu0 %v309
      %v520 = vpop.f32.mrb[0].mxu0
      %v521 = vadd.f32 0.0, %v520
      %v522 = vpop.f32.mrb[0].mxu0
      %523 = vmatprep.mubr.f32.mxu0 0.0
      %524 = vmatmul.mubr.f32.gmra.mrb[0].mxu0 %v312
      %v525 = vpop.f32.mrb[0].mxu0
      %v526 = vadd.f32 0.0, %v525
      %v527 = vpop.f32.mrb[0].mxu0
      %528 = vmatprep.mubr.f32.mxu0 0.0
      %529 = vmatmul.mubr.f32.gmra.mrb[0].mxu0 %v315
      %v530 = vpop.f32.mrb[0].mxu0
      %v531 = vadd.f32 0.0, %v530
      %v532 = vpop.f32.mrb[0].mxu0
      %533 = vmatprep.mubr.f32.mxu0 0.0
      %534 = vmatmul.mubr.f32.gmra.mrb[0].mxu0 %v318
      %v535 = vpop.f32.mrb[0].mxu0
      %v536 = vadd.f32 0.0, %v535
      %v537 = vpop.f32.mrb[0].mxu0
      %538 = vmatprep.mubr.f32.mxu0 0.0
      %539 = vmatmul.mubr.f32.gmra.mrb[0].mxu0 %v321
      %v540 = vpop.f32.mrb[0].mxu0
      %v541 = vadd.f32 0.0, %v540
      %v542 = vpop.f32.mrb[0].mxu0
      %543 = vmatprep.mubr.f32.mxu0 0.0
      %544 = vmatmul.mubr.f32.gmra.mrb[0].mxu0 %v324
      %v545 = vpop.f32.mrb[0].mxu0
      %v546 = vadd.f32 0.0, %v545
      %v547 = vpop.f32.mrb[0].mxu0
      %548 = vmatprep.mubr.f32.mxu0 0.0
      %549 = vmatmul.mubr.f32.gmra.mrb[0].mxu0 %v327
      %v550 = vpop.f32.mrb[0].mxu0
      %v551 = vadd.f32 0.0, %v550
      %v552 = vpop.f32.mrb[0].mxu0
      %553 = vmatprep.mubr.f32.mxu0 0.0
      %554 = vmatmul.mubr.f32.gmra.mrb[0].mxu0 %v330
      %v555 = vpop.f32.mrb[0].mxu0
      %v556 = vadd.f32 0.0, %v555
      %v557 = vpop.f32.mrb[0].mxu0
      %558 = vmatprep.mubr.f32.mxu0 0.0
      %559 = vmatmul.mubr.f32.gmra.mrb[0].mxu0 %v333
      %v560 = vpop.f32.mrb[0].mxu0
      %v561 = vadd.f32 0.0, %v560
      %v562 = vpop.f32.mrb[0].mxu0
      %563 = vdwg.mxu0
      %v564 = vld [vmem:[%s2] sm:$0x1]
      %v566 = vlaneseq
      %v567 = vshrl.u32 %v566, 7
      %v568 = vsub.s32 0, %v567
      %v569 = vrot.slane %v564, %v568
      %v571 = vmul.f32 %v406, %v569
      %v572 = vmul.f32 %v411, %v569
      %v573 = vmul.f32 %v416, %v569
      %v574 = vmul.f32 %v421, %v569
      %v575 = vmul.f32 %v426, %v569
      %v576 = vmul.f32 %v431, %v569
      %v577 = vmul.f32 %v436, %v569
      %v578 = vmul.f32 %v441, %v569
      %v579 = vmul.f32 %v446, %v569
      %v580 = vmul.f32 %v451, %v569
      %v581 = vmul.f32 %v456, %v569
      %v582 = vmul.f32 %v461, %v569
      %v583 = vmul.f32 %v466, %v569
      %v584 = vmul.f32 %v471, %v569
      %v585 = vmul.f32 %v476, %v569
      %v586 = vmul.f32 %v481, %v569
      %v587 = vmul.f32 %v486, %v569
      %v588 = vmul.f32 %v491, %v569
      %v589 = vmul.f32 %v496, %v569
      %v590 = vmul.f32 %v501, %v569
      %v591 = vmul.f32 %v506, %v569
      %v592 = vmul.f32 %v511, %v569
      %v593 = vmul.f32 %v516, %v569
      %v594 = vmul.f32 %v521, %v569
      %v595 = vmul.f32 %v526, %v569
      %v596 = vmul.f32 %v531, %v569
      %v597 = vmul.f32 %v536, %v569
      %v598 = vmul.f32 %v541, %v569
      %v599 = vmul.f32 %v546, %v569
      %v600 = vmul.f32 %v551, %v569
      %v601 = vmul.f32 %v556, %v569
      %v602 = vmul.f32 %v561, %v569
      %v603 = vld [vmem:[%s3] sm:$0x1]
      %v605 = vlaneseq
      %v606 = vshrl.u32 %v605, 7
      %v607 = vsub.s32 0, %v606
      %v608 = vrot.slane %v603, %v607
      %v610 = vadd.f32 %v571, %v608
      %v611 = vadd.f32 %v572, %v608
      %v612 = vadd.f32 %v573, %v608
      %v613 = vadd.f32 %v574, %v608
      %v614 = vadd.f32 %v575, %v608
      %v615 = vadd.f32 %v576, %v608
      %v616 = vadd.f32 %v577, %v608
      %v617 = vadd.f32 %v578, %v608
      %v618 = vadd.f32 %v579, %v608
      %v619 = vadd.f32 %v580, %v608
      %v620 = vadd.f32 %v581, %v608
      %v621 = vadd.f32 %v582, %v608
      %v622 = vadd.f32 %v583, %v608
      %v623 = vadd.f32 %v584, %v608
      %v624 = vadd.f32 %v585, %v608
      %v625 = vadd.f32 %v586, %v608
      %v626 = vadd.f32 %v587, %v608
      %v627 = vadd.f32 %v588, %v608
      %v628 = vadd.f32 %v589, %v608
      %v629 = vadd.f32 %v590, %v608
      %v630 = vadd.f32 %v591, %v608
      %v631 = vadd.f32 %v592, %v608
      %v632 = vadd.f32 %v593, %v608
      %v633 = vadd.f32 %v594, %v608
      %v634 = vadd.f32 %v595, %v608
      %v635 = vadd.f32 %v596, %v608
      %v636 = vadd.f32 %v597, %v608
      %v637 = vadd.f32 %v598, %v608
      %v638 = vadd.f32 %v599, %v608
      %v639 = vadd.f32 %v600, %v608
      %v640 = vadd.f32 %v601, %v608
      %v641 = vadd.f32 %v602, %v608
      %v642 = vmax.f32 %v610, 0.0
      %v643 = vmax.f32 %v611, 0.0
      %v644 = vmax.f32 %v612, 0.0
      %v645 = vmax.f32 %v613, 0.0
      %v646 = vmax.f32 %v614, 0.0
      %v647 = vmax.f32 %v615, 0.0
      %v648 = vmax.f32 %v616, 0.0
      %v649 = vmax.f32 %v617, 0.0
      %v650 = vmax.f32 %v618, 0.0
      %v651 = vmax.f32 %v619, 0.0
      %v652 = vmax.f32 %v620, 0.0
      %v653 = vmax.f32 %v621, 0.0
      %v654 = vmax.f32 %v622, 0.0
      %v655 = vmax.f32 %v623, 0.0
      %v656 = vmax.f32 %v624, 0.0
      %v657 = vmax.f32 %v625, 0.0
      %v658 = vmax.f32 %v626, 0.0
      %v659 = vmax.f32 %v627, 0.0
      %v660 = vmax.f32 %v628, 0.0
      %v661 = vmax.f32 %v629, 0.0
      %v662 = vmax.f32 %v630, 0.0
      %v663 = vmax.f32 %v631, 0.0
      %v664 = vmax.f32 %v632, 0.0
      %v665 = vmax.f32 %v633, 0.0
      %v666 = vmax.f32 %v634, 0.0
      %v667 = vmax.f32 %v635, 0.0
      %v668 = vmax.f32 %v636, 0.0
      %v669 = vmax.f32 %v637, 0.0
      %v670 = vmax.f32 %v638, 0.0
      %v671 = vmax.f32 %v639, 0.0
      %v672 = vmax.f32 %v640, 0.0
      %v673 = vmax.f32 %v641, 0.0
      %vm674 = vcmask 261120
      %675 = vst.msk [vmem:[%s199] sm:$0xff] %vm674, %v642
      %676 = vst.msk [vmem:[%s199 + $0x8] sm:$0xff] %vm674, %v643
      %677 = vst.msk [vmem:[%s199 + $0x10] sm:$0xff] %vm674, %v644
      %678 = vst.msk [vmem:[%s199 + $0x18] sm:$0xff] %vm674, %v645
      %679 = vst.msk [vmem:[%s199 + $0x20] sm:$0xff] %vm674, %v646
      %680 = vst.msk [vmem:[%s199 + $0x28] sm:$0xff] %vm674, %v647
      %681 = vst.msk [vmem:[%s199 + $0x30] sm:$0xff] %vm674, %v648
      %682 = vst.msk [vmem:[%s199 + $0x38] sm:$0xff] %vm674, %v649
      %683 = vst.msk [vmem:[%s199 + $0x40] sm:$0xff] %vm674, %v650
      %684 = vst.msk [vmem:[%s199 + $0x48] sm:$0xff] %vm674, %v651
      %685 = vst.msk [vmem:[%s199 + $0x50] sm:$0xff] %vm674, %v652
      %686 = vst.msk [vmem:[%s199 + $0x58] sm:$0xff] %vm674, %v653
      %687 = vst.msk [vmem:[%s199 + $0x60] sm:$0xff] %vm674, %v654
      %688 = vst.msk [vmem:[%s199 + $0x68] sm:$0xff] %vm674, %v655
      %689 = vst.msk [vmem:[%s199 + $0x70] sm:$0xff] %vm674, %v656
      %690 = vst.msk [vmem:[%s199 + $0x78] sm:$0xff] %vm674, %v657
      %691 = vst.msk [vmem:[%s199 + $0x80] sm:$0xff] %vm674, %v658
      %692 = vst.msk [vmem:[%s199 + $0x88] sm:$0xff] %vm674, %v659
      %693 = vst.msk [vmem:[%s199 + $0x90] sm:$0xff] %vm674, %v660
      %694 = vst.msk [vmem:[%s199 + $0x98] sm:$0xff] %vm674, %v661
      %695 = vst.msk [vmem:[%s199 + $0xa0] sm:$0xff] %vm674, %v662
      %696 = vst.msk [vmem:[%s199 + $0xa8] sm:$0xff] %vm674, %v663
      %697 = vst.msk [vmem:[%s199 + $0xb0] sm:$0xff] %vm674, %v664
      %698 = vst.msk [vmem:[%s199 + $0xb8] sm:$0xff] %vm674, %v665
      %699 = vst.msk [vmem:[%s199 + $0xc0] sm:$0xff] %vm674, %v666
      %700 = vst.msk [vmem:[%s199 + $0xc8] sm:$0xff] %vm674, %v667
      %701 = vst.msk [vmem:[%s199 + $0xd0] sm:$0xff] %vm674, %v668
      %702 = vst.msk [vmem:[%s199 + $0xd8] sm:$0xff] %vm674, %v669
      %703 = vst.msk [vmem:[%s199 + $0xe0] sm:$0xff] %vm674, %v670
      %704 = vst.msk [vmem:[%s199 + $0xe8] sm:$0xff] %vm674, %v671
      %705 = vst.msk [vmem:[%s199 + $0xf0] sm:$0xff] %vm674, %v672
      %706 = vst.msk [vmem:[%s199 + $0xf8] sm:$0xff] %vm674, %v673
      %s707 = smul.u32 32, %s15
      %p708 = scmp.lt.s32.totalorder %s707, 63
      %s709 = scalar_select %p708, %s707, 63
      %s710 = smul.addr %s709, 8
      %s711 = scalar_lea.vmem %s4, %s710
      // Predicated region
      $region37: #{upblock_forward.3} parent=35 // pred_check
        %p712 = pneg %p122
      $region38: #{upblock_forward.3} parent=35 // pred_check_branch
        %714 = sbr.rel (%p712) target = $region40
      $region39: #{upblock_forward.3} parent=35 // pred_region
        %s715 = smul.u32 32, %s15
      $region40: #{upblock_forward.3} parent=35 // pred_fallthru
        _
    $region36: #{upblock_forward.3} parent=5 // pred_fallthru
      _
    %p716 = scmp.le.s32.totalorder 2, %s10
    // Predicated region
    $region41: #{upblock_forward.3} parent=5 // pred_check
      %p717 = pneg %p716
    $region42: #{upblock_forward.3} parent=5 // pred_check_branch
      %719 = sbr.rel (%p717) target = $region44
    $region43: #{upblock_forward.3} parent=5 // pred_region
      %s720 = ssub.s32 %s10, 2
      // Predicated region
      $region45: #{upblock_forward.3} parent=43 // pred_check
        %p721 = pneg %p128
      $region46: #{upblock_forward.3} parent=43 // pred_check_branch
        %723 = sbr.rel (%p721) target = $region48
      $region47: #{upblock_forward.3} parent=43 // pred_region
        %s724 = smul.u32 32, %s16
        %p725 = scmp.lt.s32.totalorder %s724, 63
        %s726 = scalar_select %p725, %s724, 63
        %s727 = smul.addr %s726, 8
        %s728 = scalar_lea.vmem %s4, %s727
      $region48: #{upblock_forward.3} parent=43 // pred_fallthru
        _
    $region44: #{upblock_forward.3} parent=5 // pred_fallthru
      _
  $region6: #{upblock_forward.3} parent=0 // loop_footer
    %s14 = sadd.s32 1, %s10
  $region7: #{upblock_forward.3} parent=0 // loop_footer_branch
    %9 = sbr.rel target = $region3
  $region8: #{upblock_forward.3} parent=0 // loop_exit
    _

// kernel: upblock_forward.2
$region0: #{upblock_forward.2}
  #allocation0 [shape = 'u32[]', space=smem, size = 0x4, offset = 0x4, fixed_abs, tag = 'smem constant byte address 0x4 - core index']
  #allocation1 [shape = 'u32[144,128]{1,0:T(1,128)}', space=vmem, size = 0x12000, scoped, tag = 'internal scratch']
  %s0 = inlined_call_operand.vmem [shape: f32[512,36], index: 0, kind: input, shape index: {}]
  %s1 = inlined_call_operand.vmem [shape: f32[36,32], index: 1, kind: input, shape index: {}]
  %s2 = inlined_call_operand.vmem [shape: f32[1,32], index: 2, kind: output, shape index: {0}]
  %s3 = inlined_call_operand.vmem [shape: f32[1,32], index: 3, kind: output, shape index: {1}]
  %4 = xla_tuple %s2, %s3
  %s5 = sld [smem:[#allocation0]]
  $region53: #{upblock_forward.2} parent=0
    _
  %s7 = ssub.s32 1, %s5
  %s8 = scalar_select 0, %s7, %s5
  loop: start=0, step=1, limit=4
  $region2: #{upblock_forward.2} parent=0 // loop_pre_header
    _
  $region3: #{upblock_forward.2} parent=0 // loop_header
    %s10 = sphi 0, %s14
    %p11 = scmp.ge.s32.totalorder %s10, 4
    %s20 = sphi 0, %s22
    %s23 = sphi 0, %s20
    %s24 = sphi 0, %s23
    %s40 = sphi 0, %s24
    %s44 = sphi 0, %s44
    %s46 = sphi 0, %s44
    %s47 = sphi 0, %s46
    %s61 = sphi 0, %s47
    %s65 = sphi 0, %s65
    %s67 = sphi 0, %s65
    %s68 = sphi 0, %s67
    %s82 = sphi 0, %s68
    %s86 = sphi 0, %s86
    %s88 = sphi 0, %s86
    %s89 = sphi 0, %s88
    %s103 = sphi 0, %s89
  $region4: #{upblock_forward.2} parent=0 // loop_header_branch
    %13 = sbr.rel (%p11) target = $region8
  $region5: #{upblock_forward.2} parent=0 // loop_body
    %s15 = ssub.s32 %s10, 1
    %s16 = ssub.s32 %s10, 2
    %s17 = sadd.s32 %s10, 1
    %s18 = ssub.s32 %s10, %s17
    %p19 = scmp.eq.s32.totalorder %s18, 0
    %s21 = sadd.s32 %s20, 1
    %s22 = scalar_select %p19, %s20, %s21
    %p25 = pneg %p19
    %p26 = scmp.eq.s32.totalorder %s10, 1
    %p27 = por %p25, %p26
    %p28 = scmp.ne.s32.totalorder %s20, %s23
    %p29 = scmp.eq.s32.totalorder %s10, 0
    %p30 = por %p28, %p29
    %p31 = scmp.ne.s32.totalorder %s20, %s23
    %p32 = scmp.eq.s32.totalorder %s15, 1
    %p33 = por %p31, %p32
    %p34 = scmp.ne.s32.totalorder %s23, %s24
    %p35 = scmp.eq.s32.totalorder %s15, 0
    %p36 = por %p34, %p35
    %p37 = scmp.ne.s32.totalorder %s23, %s24
    %p38 = scmp.eq.s32.totalorder %s16, 1
    %p39 = por %p37, %p38
    %p41 = scmp.ne.s32.totalorder %s24, %s40
    %p42 = scmp.eq.s32.totalorder %s16, 0
    %p43 = por %p41, %p42
    %s45 = sadd.s32 %s44, 1
    %p48 = scmp.eq.s32.totalorder %s10, 1
    %p49 = scmp.ne.s32.totalorder %s44, %s46
    %p50 = scmp.eq.s32.totalorder %s10, 0
    %p51 = por %p49, %p50
    %p52 = scmp.ne.s32.totalorder %s44, %s46
    %p53 = scmp.eq.s32.totalorder %s15, 1
    %p54 = por %p52, %p53
    %p55 = scmp.ne.s32.totalorder %s46, %s47
    %p56 = scmp.eq.s32.totalorder %s15, 0
    %p57 = por %p55, %p56
    %p58 = scmp.ne.s32.totalorder %s46, %s47
    %p59 = scmp.eq.s32.totalorder %s16, 1
    %p60 = por %p58, %p59
    %p62 = scmp.ne.s32.totalorder %s47, %s61
    %p63 = scmp.eq.s32.totalorder %s16, 0
    %p64 = por %p62, %p63
    %s66 = sadd.s32 %s65, 1
    %p69 = scmp.eq.s32.totalorder %s10, 1
    %p70 = scmp.ne.s32.totalorder %s65, %s67
    %p71 = scmp.eq.s32.totalorder %s10, 0
    %p72 = por %p70, %p71
    %p73 = scmp.ne.s32.totalorder %s65, %s67
    %p74 = scmp.eq.s32.totalorder %s15, 1
    %p75 = por %p73, %p74
    %p76 = scmp.ne.s32.totalorder %s67, %s68
    %p77 = scmp.eq.s32.totalorder %s15, 0
    %p78 = por %p76, %p77
    %p79 = scmp.ne.s32.totalorder %s67, %s68
    %p80 = scmp.eq.s32.totalorder %s16, 1
    %p81 = por %p79, %p80
    %p83 = scmp.ne.s32.totalorder %s68, %s82
    %p84 = scmp.eq.s32.totalorder %s16, 0
    %p85 = por %p83, %p84
    %s87 = sadd.s32 %s86, 1
    %p90 = scmp.eq.s32.totalorder %s10, 1
    %p91 = scmp.ne.s32.totalorder %s86, %s88
    %p92 = scmp.eq.s32.totalorder %s10, 0
    %p93 = por %p91, %p92
    %p94 = scmp.ne.s32.totalorder %s86, %s88
    %p95 = scmp.eq.s32.totalorder %s15, 1
    %p96 = por %p94, %p95
    %p97 = scmp.ne.s32.totalorder %s88, %s89
    %p98 = scmp.eq.s32.totalorder %s15, 0
    %p99 = por %p97, %p98
    %p100 = scmp.ne.s32.totalorder %s88, %s89
    %p101 = scmp.eq.s32.totalorder %s16, 1
    %p102 = por %p100, %p101
    %p104 = scmp.ne.s32.totalorder %s89, %s103
    %p105 = scmp.eq.s32.totalorder %s16, 0
    %p106 = por %p104, %p105
    %p107 = scmp.le.s32.totalorder 1, %s10
    %p108 = scmp.lt.s32.totalorder %s10, 3
    %p109 = pnand %p107, %p108
    %p110 = pneg %p109
    // Predicated region
    $region9: #{upblock_forward.2} parent=5 // pred_check
      _
    $region10: #{upblock_forward.2} parent=5 // pred_check_branch
      %112 = sbr.rel (%p109) target = $region12
    $region11: #{upblock_forward.2} parent=5 // pred_region
      %s113 = ssub.s32 %s10, 1
      // Predicated region
      $region13: #{upblock_forward.2} parent=11 // pred_check
        %p114 = pneg %p57
      $region14: #{upblock_forward.2} parent=11 // pred_check_branch
        %116 = sbr.rel (%p114) target = $region16
      $region15: #{upblock_forward.2} parent=11 // pred_region
        _
      $region16: #{upblock_forward.2} parent=11 // pred_fallthru
        _
    $region12: #{upblock_forward.2} parent=5 // pred_fallthru
      _
    %p117 = scmp.lt.s32.totalorder %s10, 2
    // Predicated region
    $region17: #{upblock_forward.2} parent=5 // pred_check
      %p118 = pneg %p117
    $region18: #{upblock_forward.2} parent=5 // pred_check_branch
      %120 = sbr.rel (%p118) target = $region20
    $region19: #{upblock_forward.2} parent=5 // pred_region
      // Predicated region
      $region21: #{upblock_forward.2} parent=19 // pred_check
        %p121 = pneg %p30
      $region22: #{upblock_forward.2} parent=19 // pred_check_branch
        %123 = sbr.rel (%p121) target = $region24
      $region23: #{upblock_forward.2} parent=19 // pred_region
        %s124 = smul.u32 32, %s10
        %p125 = scmp.lt.s32.totalorder %s124, 63
        %s126 = scalar_select %p125, %s124, 63
        %s127 = smul.addr %s126, 8
        %s128 = scalar_lea.vmem %s0, %s127
        %s129 = smul.u32 32, %s10
      $region24: #{upblock_forward.2} parent=19 // pred_fallthru
        _
    $region20: #{upblock_forward.2} parent=5 // pred_fallthru
      _
    %p130 = scmp.le.s32.totalorder 1, %s10
    %p131 = scmp.lt.s32.totalorder %s10, 3
    %p132 = pnand %p130, %p131
    %p133 = pneg %p132
    // Predicated region
    $region25: #{upblock_forward.2} parent=5 // pred_check
      _
    $region26: #{upblock_forward.2} parent=5 // pred_check_branch
      %135 = sbr.rel (%p132) target = $region28
    $region27: #{upblock_forward.2} parent=5 // pred_region
      %s136 = ssub.s32 %s10, 1
      %s137 = smul.u32 32, %s15
      %p138 = scmp.lt.s32.totalorder %s137, 63
      %s139 = scalar_select %p138, %s137, 63
      %s140 = smul.addr %s139, 8
      %s141 = scalar_lea.vmem %s0, %s140
      %p142 = pneg %p36
      %p143 = pneg %p33
      %p144 = pneg %p57
      %p145 = pneg %p54
      %p146 = pneg %p78
      %p147 = pneg %p75
      %p148 = pneg %p99
      %p149 = pneg %p96
      %s150 = smul.u32 32, %s15
      %p151 = scmp.lt.s32.totalorder %s150, 63
      %s152 = scalar_select %p151, %s150, 63
      %s153 = smul.addr %s152, 8
      %s154 = scalar_lea.vmem %s0, %s153
      %s155 = smul.u32 32, %s15
      %p156 = scmp.eq.s32.totalorder %s15, 0
      // Predicated region
      $region29: #{upblock_forward.2} parent=27 // pred_check
        %p157 = pneg %p156
      $region30: #{upblock_forward.2} parent=27 // pred_check_branch
        %159 = sbr.rel (%p157) target = $region32
      $region31: #{upblock_forward.2} parent=27 // pred_region
        %vm160 = vcmask 253952
        %161 = vst.msk [vmem:[%s2] sm:$0x1] %vm160, 0.0
        %162 = vst.msk [vmem:[%s3] sm:$0x1] %vm160, 0.0
      $region32: #{upblock_forward.2} parent=27 // pred_fallthru
        _
      %v163 = vld [vmem:[%s154] sm:$0xff]
      %v164 = vld [vmem:[%s154 + $0x8] sm:$0xff]
      %v165 = vld [vmem:[%s154 + $0x10] sm:$0xff]
      %v166 = vld [vmem:[%s154 + $0x18] sm:$0xff]
      %v167 = vld [vmem:[%s154 + $0x20] sm:$0xff]
      %v168 = vld [vmem:[%s154 + $0x28] sm:$0xff]
      %v169 = vld [vmem:[%s154 + $0x30] sm:$0xff]
      %v170 = vld [vmem:[%s154 + $0x38] sm:$0xff]
      %v171 = vld [vmem:[%s154 + $0x40] sm:$0xff]
      %v172 = vld [vmem:[%s154 + $0x48] sm:$0xff]
      %v173 = vld [vmem:[%s154 + $0x50] sm:$0xff]
      %v174 = vld [vmem:[%s154 + $0x58] sm:$0xff]
      %v175 = vld [vmem:[%s154 + $0x60] sm:$0xff]
      %v176 = vld [vmem:[%s154 + $0x68] sm:$0xff]
      %v177 = vld [vmem:[%s154 + $0x70] sm:$0xff]
      %v178 = vld [vmem:[%s154 + $0x78] sm:$0xff]
      %v179 = vld [vmem:[%s154 + $0x80] sm:$0xff]
      %v180 = vld [vmem:[%s154 + $0x88] sm:$0xff]
      %v181 = vld [vmem:[%s154 + $0x90] sm:$0xff]
      %v182 = vld [vmem:[%s154 + $0x98] sm:$0xff]
      %v183 = vld [vmem:[%s154 + $0xa0] sm:$0xff]
      %v184 = vld [vmem:[%s154 + $0xa8] sm:$0xff]
      %v185 = vld [vmem:[%s154 + $0xb0] sm:$0xff]
      %v186 = vld [vmem:[%s154 + $0xb8] sm:$0xff]
      %v187 = vld [vmem:[%s154 + $0xc0] sm:$0xff]
      %v188 = vld [vmem:[%s154 + $0xc8] sm:$0xff]
      %v189 = vld [vmem:[%s154 + $0xd0] sm:$0xff]
      %v190 = vld [vmem:[%s154 + $0xd8] sm:$0xff]
      %v191 = vld [vmem:[%s154 + $0xe0] sm:$0xff]
      %v192 = vld [vmem:[%s154 + $0xe8] sm:$0xff]
      %v193 = vld [vmem:[%s154 + $0xf0] sm:$0xff]
      %v194 = vld [vmem:[%s154 + $0xf8] sm:$0xff]
      %v195 = vld [vmem:[%s1] sm:$0xff]
      %v196 = vld [vmem:[%s1 + $0x8] sm:$0xff]
      %v197 = vld [vmem:[%s1 + $0x10] sm:$0xff]
      %v198 = vld [vmem:[%s1 + $0x18] sm:$0xff]
      %v199 = vld [vmem:[%s1 + $0x20] sm:$0xf]
      %vm200 = vcmask 293888
      %v202 = vsel %vm200, %v163, 0
      %v205 = vsel %vm200, %v164, 0
      %v208 = vsel %vm200, %v165, 0
      %v211 = vsel %vm200, %v166, 0
      %v214 = vsel %vm200, %v167, 0
      %v217 = vsel %vm200, %v168, 0
      %v220 = vsel %vm200, %v169, 0
      %v223 = vsel %vm200, %v170, 0
      %v226 = vsel %vm200, %v171, 0
      %v229 = vsel %vm200, %v172, 0
      %v232 = vsel %vm200, %v173, 0
      %v235 = vsel %vm200, %v174, 0
      %v238 = vsel %vm200, %v175, 0
      %v241 = vsel %vm200, %v176, 0
      %v244 = vsel %vm200, %v177, 0
      %v247 = vsel %vm200, %v178, 0
      %v250 = vsel %vm200, %v179, 0
      %v253 = vsel %vm200, %v180, 0
      %v256 = vsel %vm200, %v181, 0
      %v259 = vsel %vm200, %v182, 0
      %v262 = vsel %vm200, %v183, 0
      %v265 = vsel %vm200, %v184, 0
      %v268 = vsel %vm200, %v185, 0
      %v271 = vsel %vm200, %v186, 0
      %v274 = vsel %vm200, %v187, 0
      %v277 = vsel %vm200, %v188, 0
      %v280 = vsel %vm200, %v189, 0
      %v283 = vsel %vm200, %v190, 0
      %v286 = vsel %vm200, %v191, 0
      %v289 = vsel %vm200, %v192, 0
      %v292 = vsel %vm200, %v193, 0
      %v295 = vsel %vm200, %v194, 0
      %vm297 = vcmask 1043456
      %v299 = vsel %vm297, %v199, 0
      %301 = vmatprep.subr.mxu0 0.0
      %302 = vmatpush1.msra.mxu0 %v195
      %303 = vmatprep.subr.mxu0 0.0
      %304 = vmatpush1.msra.mxu0 %v196
      %305 = vmatprep.subr.mxu0 0.0
      %306 = vmatpush1.msra.mxu0 %v197
      %307 = vmatprep.subr.mxu0 0.0
      %308 = vmatpush1.msra.mxu0 %v198
      %309 = vmatprep.subr.mxu0 0.0
      %310 = vmatpush1.msra.mxu0 %v299
      %311 = vmatprep.subr.mxu0 0.0
      %312 = vmatpush1.msra.mxu0 0.0
      %313 = vmatprep.subr.mxu0 0.0
      %314 = vmatpush1.msra.mxu0 0.0
      %315 = vmatprep.subr.mxu0 0.0
      %316 = vmatpush1.msra.mxu0 0.0
      %317 = vmatprep.subr.mxu0 0.0
      %318 = vmatpush1.msra.mxu0 0.0
      %319 = vmatprep.subr.mxu0 0.0
      %320 = vmatpush1.msra.mxu0 0.0
      %321 = vmatprep.subr.mxu0 0.0
      %322 = vmatpush1.msra.mxu0 0.0
      %323 = vmatprep.subr.mxu0 0.0
      %324 = vmatpush1.msra.mxu0 0.0
      %325 = vmatprep.subr.mxu0 0.0
      %326 = vmatpush1.msra.mxu0 0.0
      %327 = vmatprep.subr.mxu0 0.0
      %328 = vmatpush1.msra.mxu0 0.0
      %329 = vmatprep.subr.mxu0 0.0
      %330 = vmatpush1.msra.mxu0 0.0
      %331 = vmatprep.subr.mxu0 0.0
      %332 = vmatpush1.msra.mxu0 0.0
      %333 = vmatprep.subr.mxu0 0.0
      %334 = vmatpush1.msra.mxu0 0.0
      %335 = vmatprep.subr.mxu0 0.0
      %336 = vmatpush1.msra.mxu0 0.0
      %337 = vmatprep.subr.mxu0 0.0
      %338 = vmatpush1.msra.mxu0 0.0
      %339 = vmatprep.subr.mxu0 0.0
      %340 = vmatpush1.msra.mxu0 0.0
      %341 = vmatprep.subr.mxu0 0.0
      %342 = vmatpush1.msra.mxu0 0.0
      %343 = vmatprep.subr.mxu0 0.0
      %344 = vmatpush1.msra.mxu0 0.0
      %345 = vmatprep.subr.mxu0 0.0
      %346 = vmatpush1.msra.mxu0 0.0
      %347 = vmatprep.subr.mxu0 0.0
      %348 = vmatpush1.msra.mxu0 0.0
      %349 = vmatprep.subr.mxu0 0.0
      %350 = vmatpush1.msra.mxu0 0.0
      %351 = vmatprep.subr.mxu0 0.0
      %352 = vmatpush1.msra.mxu0 0.0
      %353 = vmatprep.subr.mxu0 0.0
      %354 = vmatpush1.msra.mxu0 0.0
      %355 = vmatprep.subr.mxu0 0.0
      %356 = vmatpush1.msra.mxu0 0.0
      %357 = vmatprep.subr.mxu0 0.0
      %358 = vmatpush1.msra.mxu0 0.0
      %359 = vmatprep.subr.mxu0 0.0
      %360 = vmatpush1.msra.mxu0 0.0
      %361 = vmatprep.subr.mxu0 0.0
      %362 = vmatpush1.msra.mxu0 0.0
      %363 = vmatprep.subr.mxu0 0.0
      %364 = vmatpush1.msra.mxu0 0.0
      %365 = vmatprep.mubr.f32.mxu0 0.0
      %366 = vmatmul.mubr.f32.gmra.mrb[0].mxu0 %v202
      %v367 = vpop.f32.mrb[0].mxu0
      %v368 = vadd.f32 0.0, %v367
      %v369 = vpop.f32.mrb[0].mxu0
      %370 = vmatprep.mubr.f32.mxu0 0.0
      %371 = vmatmul.mubr.f32.gmra.mrb[0].mxu0 %v205
      %v372 = vpop.f32.mrb[0].mxu0
      %v373 = vadd.f32 0.0, %v372
      %v374 = vpop.f32.mrb[0].mxu0
      %375 = vmatprep.mubr.f32.mxu0 0.0
      %376 = vmatmul.mubr.f32.gmra.mrb[0].mxu0 %v208
      %v377 = vpop.f32.mrb[0].mxu0
      %v378 = vadd.f32 0.0, %v377
      %v379 = vpop.f32.mrb[0].mxu0
      %380 = vmatprep.mubr.f32.mxu0 0.0
      %381 = vmatmul.mubr.f32.gmra.mrb[0].mxu0 %v211
      %v382 = vpop.f32.mrb[0].mxu0
      %v383 = vadd.f32 0.0, %v382
      %v384 = vpop.f32.mrb[0].mxu0
      %385 = vmatprep.mubr.f32.mxu0 0.0
      %386 = vmatmul.mubr.f32.gmra.mrb[0].mxu0 %v214
      %v387 = vpop.f32.mrb[0].mxu0
      %v388 = vadd.f32 0.0, %v387
      %v389 = vpop.f32.mrb[0].mxu0
      %390 = vmatprep.mubr.f32.mxu0 0.0
      %391 = vmatmul.mubr.f32.gmra.mrb[0].mxu0 %v217
      %v392 = vpop.f32.mrb[0].mxu0
      %v393 = vadd.f32 0.0, %v392
      %v394 = vpop.f32.mrb[0].mxu0
      %395 = vmatprep.mubr.f32.mxu0 0.0
      %396 = vmatmul.mubr.f32.gmra.mrb[0].mxu0 %v220
      %v397 = vpop.f32.mrb[0].mxu0
      %v398 = vadd.f32 0.0, %v397
      %v399 = vpop.f32.mrb[0].mxu0
      %400 = vmatprep.mubr.f32.mxu0 0.0
      %401 = vmatmul.mubr.f32.gmra.mrb[0].mxu0 %v223
      %v402 = vpop.f32.mrb[0].mxu0
      %v403 = vadd.f32 0.0, %v402
      %v404 = vpop.f32.mrb[0].mxu0
      %405 = vmatprep.mubr.f32.mxu0 0.0
      %406 = vmatmul.mubr.f32.gmra.mrb[0].mxu0 %v226
      %v407 = vpop.f32.mrb[0].mxu0
      %v408 = vadd.f32 0.0, %v407
      %v409 = vpop.f32.mrb[0].mxu0
      %410 = vmatprep.mubr.f32.mxu0 0.0
      %411 = vmatmul.mubr.f32.gmra.mrb[0].mxu0 %v229
      %v412 = vpop.f32.mrb[0].mxu0
      %v413 = vadd.f32 0.0, %v412
      %v414 = vpop.f32.mrb[0].mxu0
      %415 = vmatprep.mubr.f32.mxu0 0.0
      %416 = vmatmul.mubr.f32.gmra.mrb[0].mxu0 %v232
      %v417 = vpop.f32.mrb[0].mxu0
      %v418 = vadd.f32 0.0, %v417
      %v419 = vpop.f32.mrb[0].mxu0
      %420 = vmatprep.mubr.f32.mxu0 0.0
      %421 = vmatmul.mubr.f32.gmra.mrb[0].mxu0 %v235
      %v422 = vpop.f32.mrb[0].mxu0
      %v423 = vadd.f32 0.0, %v422
      %v424 = vpop.f32.mrb[0].mxu0
      %425 = vmatprep.mubr.f32.mxu0 0.0
      %426 = vmatmul.mubr.f32.gmra.mrb[0].mxu0 %v238
      %v427 = vpop.f32.mrb[0].mxu0
      %v428 = vadd.f32 0.0, %v427
      %v429 = vpop.f32.mrb[0].mxu0
      %430 = vmatprep.mubr.f32.mxu0 0.0
      %431 = vmatmul.mubr.f32.gmra.mrb[0].mxu0 %v241
      %v432 = vpop.f32.mrb[0].mxu0
      %v433 = vadd.f32 0.0, %v432
      %v434 = vpop.f32.mrb[0].mxu0
      %435 = vmatprep.mubr.f32.mxu0 0.0
      %436 = vmatmul.mubr.f32.gmra.mrb[0].mxu0 %v244
      %v437 = vpop.f32.mrb[0].mxu0
      %v438 = vadd.f32 0.0, %v437
      %v439 = vpop.f32.mrb[0].mxu0
      %440 = vmatprep.mubr.f32.mxu0 0.0
      %441 = vmatmul.mubr.f32.gmra.mrb[0].mxu0 %v247
      %v442 = vpop.f32.mrb[0].mxu0
      %v443 = vadd.f32 0.0, %v442
      %v444 = vpop.f32.mrb[0].mxu0
      %445 = vmatprep.mubr.f32.mxu0 0.0
      %446 = vmatmul.mubr.f32.gmra.mrb[0].mxu0 %v250
      %v447 = vpop.f32.mrb[0].mxu0
      %v448 = vadd.f32 0.0, %v447
      %v449 = vpop.f32.mrb[0].mxu0
      %450 = vmatprep.mubr.f32.mxu0 0.0
      %451 = vmatmul.mubr.f32.gmra.mrb[0].mxu0 %v253
      %v452 = vpop.f32.mrb[0].mxu0
      %v453 = vadd.f32 0.0, %v452
      %v454 = vpop.f32.mrb[0].mxu0
      %455 = vmatprep.mubr.f32.mxu0 0.0
      %456 = vmatmul.mubr.f32.gmra.mrb[0].mxu0 %v256
      %v457 = vpop.f32.mrb[0].mxu0
      %v458 = vadd.f32 0.0, %v457
      %v459 = vpop.f32.mrb[0].mxu0
      %460 = vmatprep.mubr.f32.mxu0 0.0
      %461 = vmatmul.mubr.f32.gmra.mrb[0].mxu0 %v259
      %v462 = vpop.f32.mrb[0].mxu0
      %v463 = vadd.f32 0.0, %v462
      %v464 = vpop.f32.mrb[0].mxu0
      %465 = vmatprep.mubr.f32.mxu0 0.0
      %466 = vmatmul.mubr.f32.gmra.mrb[0].mxu0 %v262
      %v467 = vpop.f32.mrb[0].mxu0
      %v468 = vadd.f32 0.0, %v467
      %v469 = vpop.f32.mrb[0].mxu0
      %470 = vmatprep.mubr.f32.mxu0 0.0
      %471 = vmatmul.mubr.f32.gmra.mrb[0].mxu0 %v265
      %v472 = vpop.f32.mrb[0].mxu0
      %v473 = vadd.f32 0.0, %v472
      %v474 = vpop.f32.mrb[0].mxu0
      %475 = vmatprep.mubr.f32.mxu0 0.0
      %476 = vmatmul.mubr.f32.gmra.mrb[0].mxu0 %v268
      %v477 = vpop.f32.mrb[0].mxu0
      %v478 = vadd.f32 0.0, %v477
      %v479 = vpop.f32.mrb[0].mxu0
      %480 = vmatprep.mubr.f32.mxu0 0.0
      %481 = vmatmul.mubr.f32.gmra.mrb[0].mxu0 %v271
      %v482 = vpop.f32.mrb[0].mxu0
      %v483 = vadd.f32 0.0, %v482
      %v484 = vpop.f32.mrb[0].mxu0
      %485 = vmatprep.mubr.f32.mxu0 0.0
      %486 = vmatmul.mubr.f32.gmra.mrb[0].mxu0 %v274
      %v487 = vpop.f32.mrb[0].mxu0
      %v488 = vadd.f32 0.0, %v487
      %v489 = vpop.f32.mrb[0].mxu0
      %490 = vmatprep.mubr.f32.mxu0 0.0
      %491 = vmatmul.mubr.f32.gmra.mrb[0].mxu0 %v277
      %v492 = vpop.f32.mrb[0].mxu0
      %v493 = vadd.f32 0.0, %v492
      %v494 = vpop.f32.mrb[0].mxu0
      %495 = vmatprep.mubr.f32.mxu0 0.0
      %496 = vmatmul.mubr.f32.gmra.mrb[0].mxu0 %v280
      %v497 = vpop.f32.mrb[0].mxu0
      %v498 = vadd.f32 0.0, %v497
      %v499 = vpop.f32.mrb[0].mxu0
      %500 = vmatprep.mubr.f32.mxu0 0.0
      %501 = vmatmul.mubr.f32.gmra.mrb[0].mxu0 %v283
      %v502 = vpop.f32.mrb[0].mxu0
      %v503 = vadd.f32 0.0, %v502
      %v504 = vpop.f32.mrb[0].mxu0
      %505 = vmatprep.mubr.f32.mxu0 0.0
      %506 = vmatmul.mubr.f32.gmra.mrb[0].mxu0 %v286
      %v507 = vpop.f32.mrb[0].mxu0
      %v508 = vadd.f32 0.0, %v507
      %v509 = vpop.f32.mrb[0].mxu0
      %510 = vmatprep.mubr.f32.mxu0 0.0
      %511 = vmatmul.mubr.f32.gmra.mrb[0].mxu0 %v289
      %v512 = vpop.f32.mrb[0].mxu0
      %v513 = vadd.f32 0.0, %v512
      %v514 = vpop.f32.mrb[0].mxu0
      %515 = vmatprep.mubr.f32.mxu0 0.0
      %516 = vmatmul.mubr.f32.gmra.mrb[0].mxu0 %v292
      %v517 = vpop.f32.mrb[0].mxu0
      %v518 = vadd.f32 0.0, %v517
      %v519 = vpop.f32.mrb[0].mxu0
      %520 = vmatprep.mubr.f32.mxu0 0.0
      %521 = vmatmul.mubr.f32.gmra.mrb[0].mxu0 %v295
      %v522 = vpop.f32.mrb[0].mxu0
      %v523 = vadd.f32 0.0, %v522
      %v524 = vpop.f32.mrb[0].mxu0
      %525 = vdwg.mxu0
      %v526 = vld [vmem:[%s2] sm:$0x1]
      %vm527 = vcmask 261120
      %v528 = vsel %vm527, %v368, 0.0
      %v529 = vsel %vm527, %v373, 0.0
      %v530 = vadd.f32 %v528, %v529
      %v531 = vsel %vm527, %v378, 0.0
      %v532 = vadd.f32 %v530, %v531
      %v533 = vsel %vm527, %v383, 0.0
      %v534 = vadd.f32 %v532, %v533
      %v535 = vsel %vm527, %v388, 0.0
      %v536 = vadd.f32 %v534, %v535
      %v537 = vsel %vm527, %v393, 0.0
      %v538 = vadd.f32 %v536, %v537
      %v539 = vsel %vm527, %v398, 0.0
      %v540 = vadd.f32 %v538, %v539
      %v541 = vsel %vm527, %v403, 0.0
      %v542 = vadd.f32 %v540, %v541
      %v543 = vsel %vm527, %v408, 0.0
      %v544 = vadd.f32 %v542, %v543
      %v545 = vsel %vm527, %v413, 0.0
      %v546 = vadd.f32 %v544, %v545
      %v547 = vsel %vm527, %v418, 0.0
      %v548 = vadd.f32 %v546, %v547
      %v549 = vsel %vm527, %v423, 0.0
      %v550 = vadd.f32 %v548, %v549
      %v551 = vsel %vm527, %v428, 0.0
      %v552 = vadd.f32 %v550, %v551
      %v553 = vsel %vm527, %v433, 0.0
      %v554 = vadd.f32 %v552, %v553
      %v555 = vsel %vm527, %v438, 0.0
      %v556 = vadd.f32 %v554, %v555
      %v557 = vsel %vm527, %v443, 0.0
      %v558 = vadd.f32 %v556, %v557
      %v559 = vsel %vm527, %v448, 0.0
      %v560 = vadd.f32 %v558, %v559
      %v561 = vsel %vm527, %v453, 0.0
      %v562 = vadd.f32 %v560, %v561
      %v563 = vsel %vm527, %v458, 0.0
      %v564 = vadd.f32 %v562, %v563
      %v565 = vsel %vm527, %v463, 0.0
      %v566 = vadd.f32 %v564, %v565
      %v567 = vsel %vm527, %v468, 0.0
      %v568 = vadd.f32 %v566, %v567
      %v569 = vsel %vm527, %v473, 0.0
      %v570 = vadd.f32 %v568, %v569
      %v571 = vsel %vm527, %v478, 0.0
      %v572 = vadd.f32 %v570, %v571
      %v573 = vsel %vm527, %v483, 0.0
      %v574 = vadd.f32 %v572, %v573
      %v575 = vsel %vm527, %v488, 0.0
      %v576 = vadd.f32 %v574, %v575
      %v577 = vsel %vm527, %v493, 0.0
      %v578 = vadd.f32 %v576, %v577
      %v579 = vsel %vm527, %v498, 0.0
      %v580 = vadd.f32 %v578, %v579
      %v581 = vsel %vm527, %v503, 0.0
      %v582 = vadd.f32 %v580, %v581
      %v583 = vsel %vm527, %v508, 0.0
      %v584 = vadd.f32 %v582, %v583
      %v585 = vsel %vm527, %v513, 0.0
      %v586 = vadd.f32 %v584, %v585
      %v587 = vsel %vm527, %v518, 0.0
      %v588 = vadd.f32 %v586, %v587
      %v589 = vsel %vm527, %v523, 0.0
      %v590 = vadd.f32 %v588, %v589
      %v591 = vrot.slane %v590, 4
      %v592 = vadd.f32 %v590, %v591
      %v593 = vrot.slane %v592, 2
      %v594 = vadd.f32 %v592, %v593
      %v595 = vrot.slane %v594, 1
      %v596 = vadd.f32 %v594, %v595
      %v597 = vadd.f32 %v526, %v596
      %vm598 = vcmask 253952
      %599 = vst.msk [vmem:[%s2] sm:$0x1] %vm598, %v597
      %v600 = vld [vmem:[%s3] sm:$0x1]
      %v601 = vmul.f32 %v368, %v368
      %v602 = vmul.f32 %v373, %v373
      %v603 = vmul.f32 %v378, %v378
      %v604 = vmul.f32 %v383, %v383
      %v605 = vmul.f32 %v388, %v388
      %v606 = vmul.f32 %v393, %v393
      %v607 = vmul.f32 %v398, %v398
      %v608 = vmul.f32 %v403, %v403
      %v609 = vmul.f32 %v408, %v408
      %v610 = vmul.f32 %v413, %v413
      %v611 = vmul.f32 %v418, %v418
      %v612 = vmul.f32 %v423, %v423
      %v613 = vmul.f32 %v428, %v428
      %v614 = vmul.f32 %v433, %v433
      %v615 = vmul.f32 %v438, %v438
      %v616 = vmul.f32 %v443, %v443
      %v617 = vmul.f32 %v448, %v448
      %v618 = vmul.f32 %v453, %v453
      %v619 = vmul.f32 %v458, %v458
      %v620 = vmul.f32 %v463, %v463
      %v621 = vmul.f32 %v468, %v468
      %v622 = vmul.f32 %v473, %v473
      %v623 = vmul.f32 %v478, %v478
      %v624 = vmul.f32 %v483, %v483
      %v625 = vmul.f32 %v488, %v488
      %v626 = vmul.f32 %v493, %v493
      %v627 = vmul.f32 %v498, %v498
      %v628 = vmul.f32 %v503, %v503
      %v629 = vmul.f32 %v508, %v508
      %v630 = vmul.f32 %v513, %v513
      %v631 = vmul.f32 %v518, %v518
      %v632 = vmul.f32 %v523, %v523
      %v633 = vsel %vm527, %v601, 0.0
      %v634 = vsel %vm527, %v602, 0.0
      %v635 = vadd.f32 %v633, %v634
      %v636 = vsel %vm527, %v603, 0.0
      %v637 = vadd.f32 %v635, %v636
      %v638 = vsel %vm527, %v604, 0.0
      %v639 = vadd.f32 %v637, %v638
      %v640 = vsel %vm527, %v605, 0.0
      %v641 = vadd.f32 %v639, %v640
      %v642 = vsel %vm527, %v606, 0.0
      %v643 = vadd.f32 %v641, %v642
      %v644 = vsel %vm527, %v607, 0.0
      %v645 = vadd.f32 %v643, %v644
      %v646 = vsel %vm527, %v608, 0.0
      %v647 = vadd.f32 %v645, %v646
      %v648 = vsel %vm527, %v609, 0.0
      %v649 = vadd.f32 %v647, %v648
      %v650 = vsel %vm527, %v610, 0.0
      %v651 = vadd.f32 %v649, %v650
      %v652 = vsel %vm527, %v611, 0.0
      %v653 = vadd.f32 %v651, %v652
      %v654 = vsel %vm527, %v612, 0.0
      %v655 = vadd.f32 %v653, %v654
      %v656 = vsel %vm527, %v613, 0.0
      %v657 = vadd.f32 %v655, %v656
      %v658 = vsel %vm527, %v614, 0.0
      %v659 = vadd.f32 %v657, %v658
      %v660 = vsel %vm527, %v615, 0.0
      %v661 = vadd.f32 %v659, %v660
      %v662 = vsel %vm527, %v616, 0.0
      %v663 = vadd.f32 %v661, %v662
      %v664 = vsel %vm527, %v617, 0.0
      %v665 = vadd.f32 %v663, %v664
      %v666 = vsel %vm527, %v618, 0.0
      %v667 = vadd.f32 %v665, %v666
      %v668 = vsel %vm527, %v619, 0.0
      %v669 = vadd.f32 %v667, %v668
      %v670 = vsel %vm527, %v620, 0.0
      %v671 = vadd.f32 %v669, %v670
      %v672 = vsel %vm527, %v621, 0.0
      %v673 = vadd.f32 %v671, %v672
      %v674 = vsel %vm527, %v622, 0.0
      %v675 = vadd.f32 %v673, %v674
      %v676 = vsel %vm527, %v623, 0.0
      %v677 = vadd.f32 %v675, %v676
      %v678 = vsel %vm527, %v624, 0.0
      %v679 = vadd.f32 %v677, %v678
      %v680 = vsel %vm527, %v625, 0.0
      %v681 = vadd.f32 %v679, %v680
      %v682 = vsel %vm527, %v626, 0.0
      %v683 = vadd.f32 %v681, %v682
      %v684 = vsel %vm527, %v627, 0.0
      %v685 = vadd.f32 %v683, %v684
      %v686 = vsel %vm527, %v628, 0.0
      %v687 = vadd.f32 %v685, %v686
      %v688 = vsel %vm527, %v629, 0.0
      %v689 = vadd.f32 %v687, %v688
      %v690 = vsel %vm527, %v630, 0.0
      %v691 = vadd.f32 %v689, %v690
      %v692 = vsel %vm527, %v631, 0.0
      %v693 = vadd.f32 %v691, %v692
      %v694 = vsel %vm527, %v632, 0.0
      %v695 = vadd.f32 %v693, %v694
      %v696 = vrot.slane %v695, 4
      %v697 = vadd.f32 %v695, %v696
      %v698 = vrot.slane %v697, 2
      %v699 = vadd.f32 %v697, %v698
      %v700 = vrot.slane %v699, 1
      %v701 = vadd.f32 %v699, %v700
      %v702 = vadd.f32 %v600, %v701
      %703 = vst.msk [vmem:[%s3] sm:$0x1] %vm598, %v702
      // Predicated region
      $region33: #{upblock_forward.2} parent=27 // pred_check
        %p704 = pneg %p75
      $region34: #{upblock_forward.2} parent=27 // pred_check_branch
        %706 = sbr.rel (%p704) target = $region36
      $region35: #{upblock_forward.2} parent=27 // pred_region
        _
      $region36: #{upblock_forward.2} parent=27 // pred_fallthru
        _
      // Predicated region
      $region37: #{upblock_forward.2} parent=27 // pred_check
        %p707 = pneg %p96
      $region38: #{upblock_forward.2} parent=27 // pred_check_branch
        %709 = sbr.rel (%p707) target = $region40
      $region39: #{upblock_forward.2} parent=27 // pred_region
        _
      $region40: #{upblock_forward.2} parent=27 // pred_fallthru
        _
      // Predicated region
      $region41: #{upblock_forward.2} parent=27 // pred_check
        %p710 = pneg %p75
      $region42: #{upblock_forward.2} parent=27 // pred_check_branch
        %712 = sbr.rel (%p710) target = $region44
      $region43: #{upblock_forward.2} parent=27 // pred_region
        _
      $region44: #{upblock_forward.2} parent=27 // pred_fallthru
        _
      // Predicated region
      $region45: #{upblock_forward.2} parent=27 // pred_check
        %p713 = pneg %p96
      $region46: #{upblock_forward.2} parent=27 // pred_check_branch
        %715 = sbr.rel (%p713) target = $region48
      $region47: #{upblock_forward.2} parent=27 // pred_region
        _
      $region48: #{upblock_forward.2} parent=27 // pred_fallthru
        _
    $region28: #{upblock_forward.2} parent=5 // pred_fallthru
      _
    %p716 = scmp.le.s32.totalorder 2, %s10
    // Predicated region
    $region49: #{upblock_forward.2} parent=5 // pred_check
      %p717 = pneg %p716
    $region50: #{upblock_forward.2} parent=5 // pred_check_branch
      %719 = sbr.rel (%p717) target = $region52
    $region51: #{upblock_forward.2} parent=5 // pred_region
      %s720 = ssub.s32 %s10, 2
    $region52: #{upblock_forward.2} parent=5 // pred_fallthru
      _
  $region6: #{upblock_forward.2} parent=0 // loop_footer
    %s14 = sadd.s32 1, %s10
  $region7: #{upblock_forward.2} parent=0 // loop_footer_branch
    %9 = sbr.rel target = $region3
  $region8: #{upblock_forward.2} parent=0 // loop_exit
    _

</llo_original>
